<compile_context>
chip_gen: v5e
topology: v5e:2x2
jax: 0.10.0
libtpu: 0.0.40
codegen_flags: <defaults>
</compile_context>

<pallas_src>
import numpy as np
import jax
import jax.numpy as jnp
from jax import lax
from jax.experimental import pallas as pl
from jax.experimental.pallas import tpu as pltpu

# Hyper-parameters matching the PyTorch module defaults.
CONSISTENCY_WEIGHT = 0.1   # CombinedTemporalLoss.consistency_weight
MOTION_WEIGHT = 0.05       # CombinedTemporalLoss.motion_weight == TemporalMotionLoss.motion_weight
REG_WEIGHT = 0.01          # CombinedTemporalLoss.reg_weight
ALPHA = 0.1                # TemporalConsistencyLoss.alpha
BETA = 0.05                # TemporalConsistencyLoss.beta
ENTROPY_W = 0.01           # TemporalAttentionRegularization.entropy_weight
SPARSITY_W = 0.005         # TemporalAttentionRegularization.sparsity_weight

# Fixed (non-trainable) sobel weights, identical to the module's __init__ (used by the
# pure-JAX reference; the kernel uses the separable [1,2,1]x[-1,0,1] decomposition).
SOBEL_X = ((-1.0, 0.0, 1.0), (-2.0, 0.0, 2.0), (-1.0, 0.0, 1.0))
SOBEL_Y = ((-1.0, -2.0, -1.0), (0.0, 0.0, 0.0), (1.0, 2.0, 1.0))


def _vmem_limit_bytes():
    """Generation-aware scoped-VMEM limit: ~3/4 of physical, capped at 100 MiB."""
    cap = None
    try:
        info = pltpu.get_tpu_info()
        cap = getattr(info, "vmem_capacity_bytes", None)
    except Exception:
        cap = None
    if not cap:
        cap = 128 * 1024 * 1024
    return int(min(cap * 3 // 4, 100 * 1024 * 1024))


def _reduce_rl(x):
    """(R, L) -> (1, 1): major-axis reduce first (mostly VALU vreg adds), then one lane reduce."""
    s = jnp.sum(x, axis=0, keepdims=True)        # (1, L)
    return jnp.sum(s, axis=1, keepdims=True)     # (1, 1)


def _sobel_motion(d, masks, H, W):
    """Separable 3x3 sobel gradient magnitude of `d` (C, H, W) with zero padding,
    implemented with pltpu.roll shifts + edge masks (no scratch buffer, no relayouts)."""
    not_first_col, not_last_col, not_first_row, not_last_row = masks
    # Horizontal shifts (lane axis), shared by gx and gy.
    d_xm1 = jnp.where(not_first_col, pltpu.roll(d, shift=1, axis=2), 0.0)       # d[..., x-1]
    d_xp1 = jnp.where(not_last_col, pltpu.roll(d, shift=W - 1, axis=2), 0.0)    # d[..., x+1]
    hx = d_xp1 - d_xm1               # horizontal [-1, 0, 1]
    hy = d_xm1 + 2.0 * d + d_xp1     # horizontal [ 1, 2, 1]
    # Vertical shifts (sublane axis).
    hx_ym1 = jnp.where(not_first_row, pltpu.roll(hx, shift=1, axis=1), 0.0)     # hx[..., y-1, :]
    hx_yp1 = jnp.where(not_last_row, pltpu.roll(hx, shift=H - 1, axis=1), 0.0)  # hx[..., y+1, :]
    hy_ym1 = jnp.where(not_first_row, pltpu.roll(hy, shift=1, axis=1), 0.0)
    hy_yp1 = jnp.where(not_last_row, pltpu.roll(hy, shift=H - 1, axis=1), 0.0)
    gx = hx_ym1 + 2.0 * hx + hx_yp1  # vertical [1, 2, 1]
    gy = hy_yp1 - hy_ym1             # vertical [-1, 0, 1]
    # (|gx|^2 == gx^2, so the reference's abs-before-square is dropped.)
    return jnp.sqrt(gx * gx + gy * gy + 1e-8)


def _build_frame_kernel(C, H, W, R, L):
    def kernel(real_ref, fake_ref, feat_ref, out_ref,
               prev_real, prev_fake, prev_feat, prev_fnorm,
               acc_frame, acc_motion, acc_feat):
        t = pl.program_id(1)
        n_t = pl.num_programs(1)

        real_cur = real_ref[...].astype(jnp.float32)   # (C, H, W)
        fake_cur = fake_ref[...].astype(jnp.float32)   # (C, H, W)
        feat_cur = feat_ref[...].astype(jnp.float32)   # (R, L), lane-dense
        fnorm_cur = jnp.sqrt(_reduce_rl(feat_cur * feat_cur))  # (1, 1)

        @pl.when(t == 0)
        def _():
            acc_frame[...] = jnp.zeros_like(acc_frame)
            acc_motion[...] = jnp.zeros_like(acc_motion)
            acc_feat[...] = jnp.zeros_like(acc_feat)

        @pl.when(t > 0)
        def _():
            fake_diff = jnp.abs(prev_fake[...].astype(jnp.float32) - fake_cur)
            real_diff = jnp.abs(prev_real[...].astype(jnp.float32) - real_cur)

            # --- TemporalConsistencyLoss: frame-difference term (generated frames) ---
            acc_frame[...] += jnp.sum(fake_diff, axis=0)          # (H, W)

            # --- TemporalMotionLoss: separable roll-based sobel motion maps ---
            col = lax.broadcasted_iota(jnp.int32, (C, H, W), 2)
            row = lax.broadcasted_iota(jnp.int32, (C, H, W), 1)
            masks = (col >= 1, col <= W - 2, row >= 1, row <= H - 2)
            m_fake = _sobel_motion(fake_diff, masks, H, W)
            m_real = _sobel_motion(real_diff, masks, H, W)
            acc_motion[...] += jnp.sum(jnp.abs(m_real - m_fake), axis=0)   # (H, W)

            # --- TemporalConsistencyLoss: feature cosine-similarity term ---
            d12 = _reduce_rl(prev_feat[...].astype(jnp.float32) * feat_cur)  # (1, 1)
            denom = jnp.maximum(prev_fnorm[...] * fnorm_cur, 1e-8)           # (1, 1)
            acc_feat[...] += 1.0 - d12 / denom

        @pl.when(t < n_t - 1)
        def _():
            # Carry previous state in the *input* dtype (halves carry traffic for bf16).
            prev_real[...] = real_ref[...]
            prev_fake[...] = fake_ref[...]
            prev_feat[...] = feat_ref[...]
            prev_fnorm[...] = fnorm_cur

        @pl.when(t == n_t - 1)
        def _():
            # Emit raw per-b partial sums; normalization / weighting happen in the wrapper
            # so the batch grid axis stays fully parallel.
            frame_sum = jnp.sum(acc_frame[...])
            motion_sum = jnp.sum(acc_motion[...])
            feat_sum = jnp.sum(acc_feat[...])
            lane = lax.broadcasted_iota(jnp.int32, (8, 128), 1)
            out_ref[...] = (jnp.where(lane == 0, frame_sum, 0.0)
                            + jnp.where(lane == 1, motion_sum, 0.0)
                            + jnp.where(lane == 2, feat_sum, 0.0))

    return kernel


def _build_att_kernel(m_tile, lane, ent_scale, sp_scale):
    groups = m_tile // 8

    def kernel(att_ref, out_ref):
        a = att_ref[...].astype(jnp.float32)
        # Fused, pre-weighted entropy + sparsity contribution (zero padding contributes 0).
        fused = ent_scale * (a * jnp.log(a + 1e-8)) + sp_scale * jnp.abs(a)
        # In-register pre-reduction to (8, lane): layout-preserving reshape + VALU vreg adds.
        out_ref[...] = jnp.sum(fused.reshape(groups, 8, lane), axis=0)

    return kernel


def _feat_layout(fhw):
    """Lane-dense 2-D factorization of the flattened feature volume, preferring R >= 8."""
    best = None
    for lane in (1024, 512, 256, 128):
        if fhw % lane == 0:
            r = fhw // lane
            if r >= 8:
                return r, lane
            if best is None:
                best = (r, lane)
    if best is not None:
        return best
    return 1, fhw  # lane-sparse fallback (still correct)


def _att_layout(numel):
    """Lane-dense (rows, lane) layout for the flattened attention tensor (pad if needed)."""
    for lane in (512, 256, 128):
        if numel % lane == 0 and (numel // lane) % 8 == 0:
            rows = numel // lane
            pad = 0
            break
    else:
        lane = 512
        rows = -(-numel // lane)          # ceil
        rows = -(-rows // 8) * 8          # round up to a multiple of 8 sublanes
        pad = rows * lane - numel
    m_tile = rows
    for cand in (512, 256, 128, 64, 32, 16, 8):
        if cand <= rows and rows % cand == 0:
            m_tile = cand
            break
    return rows, lane, m_tile, pad


def combined_temporal_loss(real_frames, fake_frames, features, attention_weights):
    """real_frames, fake_frames: (B, T, C, H, W); features: (B, T, F, H, W);
    attention_weights: (N, heads, T, T). Returns the PyTorch module's loss dict."""
    B, T, C, H, W = real_frames.shape
    if T < 2:
        raise ValueError("CombinedTemporalLoss requires T >= 2 frames.")
    F_ = features.shape[2]
    fhw = F_ * H * W
    R, L = _feat_layout(fhw)
    feat4 = features.reshape(B, T, R, L)          # contiguous -> free reshape

    vmem_limit = _vmem_limit_bytes()

    # ---- main kernel: frame-diff, sobel-motion, feature-cosine (grid over (B, T)) ----
    frame_kernel = _build_frame_kernel(C, H, W, R, L)
    main_out = pl.pallas_call(
        frame_kernel,
        out_shape=jax.ShapeDtypeStruct((B, 8, 128), jnp.float32),
        grid=(B, T),
        in_specs=[
            pl.BlockSpec((None, None, C, H, W), lambda b, t: (b, t, 0, 0, 0)),
            pl.BlockSpec((None, None, C, H, W), lambda b, t: (b, t, 0, 0, 0)),
            pl.BlockSpec((None, None, R, L), lambda b, t: (b, t, 0, 0)),
        ],
        out_specs=pl.BlockSpec((None, 8, 128), lambda b, t: (b, 0, 0)),
        scratch_shapes=[
            pltpu.VMEM((C, H, W), real_frames.dtype),   # prev_real (carried, input dtype)
            pltpu.VMEM((C, H, W), fake_frames.dtype),   # prev_fake (carried, input dtype)
            pltpu.VMEM((R, L), features.dtype),         # prev_feat (carried, input dtype)
            pltpu.VMEM((1, 1), jnp.float32),            # prev feature norm
            pltpu.VMEM((H, W), jnp.float32),            # frame-diff accumulator
            pltpu.VMEM((H, W), jnp.float32),            # motion accumulator
            pltpu.VMEM((1, 1), jnp.float32),            # feature-cosine accumulator
        ],
        compiler_params=pltpu.CompilerParams(
            dimension_semantics=("parallel", "arbitrary"),
            vmem_limit_bytes=vmem_limit),
    )(real_frames, fake_frames, feat4)

    sums = jnp.sum(main_out[:, 0, :], axis=0)          # (128,): per-b partials summed
    frame_sum, motion_sum, feat_sum = sums[0], sums[1], sums[2]
    frame_norm = float((T - 1) * B * C * H * W)
    feat_norm = float(B * (T - 1))
    consistency = ALPHA * (frame_sum / frame_norm) + BETA * (feat_sum / feat_norm)
    motion = MOTION_WEIGHT * (motion_sum / frame_norm)

    # ---- attention regularization: lane-dense, fused, parallel tiled reduction ----
    numel = int(np.prod(attention_weights.shape))
    last_dim = int(attention_weights.shape[-1])
    rows, lane_w, m_tile, pad = _att_layout(numel)
    att_flat = attention_weights.reshape(-1)
    if pad:
        att_flat = jnp.pad(att_flat, (0, pad))          # zeros contribute exactly 0
    att2d = att_flat.reshape(rows, lane_w)
    n_tiles = rows // m_tile
    ent_scale = ENTROPY_W / float(numel // last_dim)
    sp_scale = SPARSITY_W / float(numel)

    att_kernel = _build_att_kernel(m_tile, lane_w, ent_scale, sp_scale)
    att_out = pl.pallas_call(
        att_kernel,
        out_shape=jax.ShapeDtypeStruct((n_tiles, 8, lane_w), jnp.float32),
        grid=(n_tiles,),
        in_specs=[pl.BlockSpec((m_tile, lane_w), lambda i: (i, 0))],
        out_specs=pl.BlockSpec((None, 8, lane_w), lambda i: (i, 0, 0)),
        compiler_params=pltpu.CompilerParams(
            dimension_semantics=("parallel",),
            vmem_limit_bytes=vmem_limit),
    )(att2d)
    reg = jnp.sum(att_out)

    # NOTE: MOTION_WEIGHT is applied twice on purpose (matches the PyTorch module).
    total = (CONSISTENCY_WEIGHT * consistency + MOTION_WEIGHT * motion
             + REG_WEIGHT * reg)
    return {
        "consistency": consistency,
        "motion": motion,
        "attention_reg": reg,
        "total_temporal": total,
    }


def _reference(real, fake, features, attention):
    """Pure-JAX reference mirroring the PyTorch forward."""
    B, T, C, H, W = real.shape
    real = real.astype(jnp.float32)
    fake = fake.astype(jnp.float32)
    features = features.astype(jnp.float32)
    attention = attention.astype(jnp.float32)

    fd = 0.0
    for t in range(T - 1):
        fd += jnp.mean(jnp.abs(fake[:, t] - fake[:, t + 1]))
    fd /= (T - 1)

    fc = 0.0
    for t in range(T - 1):
        a = features[:, t].reshape(B, -1)
        b = features[:, t + 1].reshape(B, -1)
        cos = jnp.sum(a * b, -1) / jnp.maximum(
            jnp.sqrt(jnp.sum(a * a, -1)) * jnp.sqrt(jnp.sum(b * b, -1)), 1e-8)
        fc += jnp.mean(1.0 - cos)
    fc /= (T - 1)
    consistency = ALPHA * fd + BETA * fc

    kx = jnp.array(SOBEL_X, jnp.float32)
    ky = jnp.array(SOBEL_Y, jnp.float32)

    def motion_map(f1, f2):
        d = jnp.abs(f1 - f2)
        dp = jnp.pad(d, ((0, 0), (0, 0), (1, 1), (1, 1)))
        gx = sum(kx[i, j] * dp[:, :, i:i + H, j:j + W] for i in range(3) for j in range(3))
        gy = sum(ky[i, j] * dp[:, :, i:i + H, j:j + W] for i in range(3) for j in range(3))
        return jnp.sqrt(jnp.abs(gx) ** 2 + jnp.abs(gy) ** 2 + 1e-8)

    ml = 0.0
    for t in range(T - 1):
        mr = motion_map(real[:, t], real[:, t + 1])
        mf = motion_map(fake[:, t], fake[:, t + 1])
        ml += jnp.mean(jnp.abs(mr - mf))
    ml /= (T - 1)
    motion = MOTION_WEIGHT * ml

    la = jnp.log(attention + 1e-8)
    entropy = -jnp.sum(attention * la, axis=-1)
    entropy_loss = -jnp.mean(entropy)
    sparsity = jnp.mean(jnp.abs(attention))
    reg = ENTROPY_W * entropy_loss + SPARSITY_W * sparsity

    total = CONSISTENCY_WEIGHT * consistency + MOTION_WEIGHT * motion + REG_WEIGHT * reg
    return consistency, motion, reg, total


if __name__ == "__main__":
    key = jax.random.PRNGKey(0)
    k1, k2, k3, k4 = jax.random.split(key, 4)

    # C must be 3 (the sobel conv in the module is Conv2d(3, 3, groups=3)).
    B, T, C, H, W = 2, 4, 3, 16, 16
    F_ = 8
    heads = 2

    real_frames = jax.random.uniform(k1, (B, T, C, H, W), jnp.float32)
    fake_frames = jax.random.uniform(k2, (B, T, C, H, W), jnp.float32)
    features = jax.random.normal(k3, (B, T, F_, H, W), jnp.float32)
    att_logits = jax.random.normal(k4, (B * H * W, heads, T, T), jnp.float32)
    attention_weights = jax.nn.softmax(att_logits, axis=-1)

    losses = combined_temporal_loss(real_frames, fake_frames, features, attention_weights)
    losses = jax.block_until_ready(losses)

    ref_c, ref_m, ref_r, ref_t = _reference(real_frames, fake_frames, features, attention_weights)
    np.testing.assert_allclose(np.asarray(losses["consistency"]), np.asarray(ref_c), rtol=1e-4, atol=1e-5)
    np.testing.assert_allclose(np.asarray(losses["motion"]), np.asarray(ref_m), rtol=1e-4, atol=1e-5)
    np.testing.assert_allclose(np.asarray(losses["attention_reg"]), np.asarray(ref_r), rtol=1e-4, atol=1e-5)
    np.testing.assert_allclose(np.asarray(losses["total_temporal"]), np.asarray(ref_t), rtol=1e-4, atol=1e-5)

    print("KERNEL_OK")
</pallas_src>

<mosaic_0001>
module attributes {stable_mosaic.version = 11 : i64} {
  func.func @kernel(%arg0: i32, %arg1: i32, %arg2: memref<1x1x3x16x16xf32, #tpu.memory_space<vmem>>, %arg3: memref<1x1x3x16x16xf32, #tpu.memory_space<vmem>>, %arg4: memref<1x1x8x256xf32, #tpu.memory_space<vmem>>, %arg5: memref<1x8x128xf32, #tpu.memory_space<vmem>>, %arg6: memref<3x16x16xf32, #tpu.memory_space<vmem>>, %arg7: memref<3x16x16xf32, #tpu.memory_space<vmem>>, %arg8: memref<8x256xf32, #tpu.memory_space<vmem>>, %arg9: memref<1x1xf32, #tpu.memory_space<vmem>>, %arg10: memref<16x16xf32, #tpu.memory_space<vmem>>, %arg11: memref<16x16xf32, #tpu.memory_space<vmem>>, %arg12: memref<1x1xf32, #tpu.memory_space<vmem>>) attributes {dimension_semantics = [#tpu.dimension_semantics<parallel>, #tpu.dimension_semantics<arbitrary>], iteration_bounds = array<i64: 2, 4>, scalar_prefetch = 0 : i64, scratch_operands = 7 : i64, tpu.core_type = #tpu.core_type<tc>, window_params = [{transform_indices = @transform_0, window_bounds = array<i64: 1, 1, 3, 16, 16>}, {transform_indices = @transform_1, window_bounds = array<i64: 1, 1, 3, 16, 16>}, {transform_indices = @transform_2, window_bounds = array<i64: 1, 1, 8, 256>}, {transform_indices = @transform_3, window_bounds = array<i64: 1, 8, 128>}]} {
    %c0 = arith.constant 0 : index
    %c0_0 = arith.constant 0 : index
    %c0_1 = arith.constant 0 : index
    %c0_2 = arith.constant 0 : index
    %c0_3 = arith.constant 0 : index
    %0 = vector.load %arg2[%c0, %c0_0, %c0_1, %c0_2, %c0_3] : memref<1x1x3x16x16xf32, #tpu.memory_space<vmem>>, vector<1x1x3x16x16xf32>
    %1 = vector.shape_cast %0 : vector<1x1x3x16x16xf32> to vector<3x16x16xf32>
    %c0_4 = arith.constant 0 : index
    %c0_5 = arith.constant 0 : index
    %c0_6 = arith.constant 0 : index
    %c0_7 = arith.constant 0 : index
    %c0_8 = arith.constant 0 : index
    %2 = vector.load %arg3[%c0_4, %c0_5, %c0_6, %c0_7, %c0_8] : memref<1x1x3x16x16xf32, #tpu.memory_space<vmem>>, vector<1x1x3x16x16xf32>
    %3 = vector.shape_cast %2 : vector<1x1x3x16x16xf32> to vector<3x16x16xf32>
    %c0_9 = arith.constant 0 : index
    %c0_10 = arith.constant 0 : index
    %c0_11 = arith.constant 0 : index
    %c0_12 = arith.constant 0 : index
    %4 = vector.load %arg4[%c0_9, %c0_10, %c0_11, %c0_12] : memref<1x1x8x256xf32, #tpu.memory_space<vmem>>, vector<1x1x8x256xf32>
    %5 = vector.shape_cast %4 : vector<1x1x8x256xf32> to vector<8x256xf32>
    %6 = arith.mulf %5, %5 : vector<8x256xf32>
    %cst = arith.constant dense<0.000000e+00> : vector<256xf32>
    %7 = vector.multi_reduction <add>, %6, %cst [0] : vector<8x256xf32> to vector<256xf32>
    %8 = vector.shape_cast %7 : vector<256xf32> to vector<1x256xf32>
    %cst_13 = arith.constant dense<0.000000e+00> : vector<1xf32>
    %9 = vector.multi_reduction <add>, %8, %cst_13 [1] : vector<1x256xf32> to vector<1xf32>
    %10 = vector.shape_cast %9 : vector<1xf32> to vector<1x1xf32>
    %11 = math.sqrt %10 : vector<1x1xf32>
    %c0_i32 = arith.constant 0 : i32
    %12 = arith.cmpi eq, %arg1, %c0_i32 : i32
    %13 = arith.extui %12 : i1 to i32
    %c0_i32_14 = arith.constant 0 : i32
    %14 = arith.cmpi ne, %13, %c0_i32_14 : i32
    scf.if %14 {
      %cst_20 = arith.constant 0.000000e+00 : f32
      %24 = vector.broadcast %cst_20 : f32 to vector<16x16xf32>
      %c0_21 = arith.constant 0 : index
      %c0_22 = arith.constant 0 : index
      %25 = vector.load %arg10[%c0_21, %c0_22] : memref<16x16xf32, #tpu.memory_space<vmem>>, vector<16x16xf32>
      tpu.vector_store %arg10[%c0_21, %c0_22], %24 {strides = array<i32>} : memref<16x16xf32, #tpu.memory_space<vmem>>, vector<16x16xf32>,
      %cst_23 = arith.constant 0.000000e+00 : f32
      %26 = vector.broadcast %cst_23 : f32 to vector<16x16xf32>
      %c0_24 = arith.constant 0 : index
      %c0_25 = arith.constant 0 : index
      %27 = vector.load %arg11[%c0_24, %c0_25] : memref<16x16xf32, #tpu.memory_space<vmem>>, vector<16x16xf32>
      tpu.vector_store %arg11[%c0_24, %c0_25], %26 {strides = array<i32>} : memref<16x16xf32, #tpu.memory_space<vmem>>, vector<16x16xf32>,
      %cst_26 = arith.constant 0.000000e+00 : f32
      %28 = vector.broadcast %cst_26 : f32 to vector<1x1xf32>
      %c0_27 = arith.constant 0 : index
      %c0_28 = arith.constant 0 : index
      %29 = vector.load %arg12[%c0_27, %c0_28] : memref<1x1xf32, #tpu.memory_space<vmem>>, vector<1x1xf32>
      tpu.vector_store %arg12[%c0_27, %c0_28], %28 {strides = array<i32>} : memref<1x1xf32, #tpu.memory_space<vmem>>, vector<1x1xf32>,
    } else {
    }
    %c0_i32_15 = arith.constant 0 : i32
    %15 = arith.cmpi sgt, %arg1, %c0_i32_15 : i32
    %16 = arith.extui %15 : i1 to i32
    %c0_i32_16 = arith.constant 0 : i32
    %17 = arith.cmpi ne, %16, %c0_i32_16 : i32
    scf.if %17 {
      %c0_20 = arith.constant 0 : index
      %c0_21 = arith.constant 0 : index
      %c0_22 = arith.constant 0 : index
      %24 = vector.load %arg7[%c0_20, %c0_21, %c0_22] : memref<3x16x16xf32, #tpu.memory_space<vmem>>, vector<3x16x16xf32>
      %25 = arith.subf %24, %3 : vector<3x16x16xf32>
      %26 = math.absf %25 : vector<3x16x16xf32>
      %c0_23 = arith.constant 0 : index
      %c0_24 = arith.constant 0 : index
      %c0_25 = arith.constant 0 : index
      %27 = vector.load %arg6[%c0_23, %c0_24, %c0_25] : memref<3x16x16xf32, #tpu.memory_space<vmem>>, vector<3x16x16xf32>
      %28 = arith.subf %27, %1 : vector<3x16x16xf32>
      %29 = math.absf %28 : vector<3x16x16xf32>
      %c0_26 = arith.constant 0 : index
      %c0_27 = arith.constant 0 : index
      %30 = vector.load %arg10[%c0_26, %c0_27] : memref<16x16xf32, #tpu.memory_space<vmem>>, vector<16x16xf32>
      %cst_28 = arith.constant dense<0.000000e+00> : vector<16x16xf32>
      %31 = vector.multi_reduction <add>, %26, %cst_28 [0] : vector<3x16x16xf32> to vector<16x16xf32>
      %32 = arith.addf %30, %31 : vector<16x16xf32>
      %c0_29 = arith.constant 0 : index
      %c0_30 = arith.constant 0 : index
      %33 = vector.load %arg10[%c0_29, %c0_30] : memref<16x16xf32, #tpu.memory_space<vmem>>, vector<16x16xf32>
      tpu.vector_store %arg10[%c0_29, %c0_30], %32 {strides = array<i32>} : memref<16x16xf32, #tpu.memory_space<vmem>>, vector<16x16xf32>,
      %34 = tpu.iota {dimensions = array<i32: 2>} : vector<3x16x16xi32>
      %35 = tpu.iota {dimensions = array<i32: 1>} : vector<3x16x16xi32>
      %c1_i32 = arith.constant 1 : i32
      %36 = vector.broadcast %c1_i32 : i32 to vector<3x16x16xi32>
      %37 = arith.cmpi sge, %34, %36 : vector<3x16x16xi32>
      %c14_i32 = arith.constant 14 : i32
      %38 = vector.broadcast %c14_i32 : i32 to vector<3x16x16xi32>
      %39 = arith.cmpi sle, %34, %38 : vector<3x16x16xi32>
      %c1_i32_31 = arith.constant 1 : i32
      %40 = vector.broadcast %c1_i32_31 : i32 to vector<3x16x16xi32>
      %41 = arith.cmpi sge, %35, %40 : vector<3x16x16xi32>
      %c14_i32_32 = arith.constant 14 : i32
      %42 = vector.broadcast %c14_i32_32 : i32 to vector<3x16x16xi32>
      %43 = arith.cmpi sle, %35, %42 : vector<3x16x16xi32>
      %c1_i32_33 = arith.constant 1 : i32
      %44 = tpu.dynamic_rotate %26 by %c1_i32_33 dim 2 : vector<3x16x16xf32>, i32 -> vector<3x16x16xf32>
      %cst_34 = arith.constant 0.000000e+00 : f32
      %45 = vector.broadcast %cst_34 : f32 to vector<3x16x16xf32>
      %46 = arith.select %37, %44, %45 : vector<3x16x16xi1>, vector<3x16x16xf32>
      %c15_i32 = arith.constant 15 : i32
      %47 = tpu.dynamic_rotate %26 by %c15_i32 dim 2 : vector<3x16x16xf32>, i32 -> vector<3x16x16xf32>
      %cst_35 = arith.constant 0.000000e+00 : f32
      %48 = vector.broadcast %cst_35 : f32 to vector<3x16x16xf32>
      %49 = arith.select %39, %47, %48 : vector<3x16x16xi1>, vector<3x16x16xf32>
      %50 = arith.subf %49, %46 : vector<3x16x16xf32>
      %cst_36 = arith.constant 2.000000e+00 : f32
      %51 = vector.broadcast %cst_36 : f32 to vector<3x16x16xf32>
      %52 = arith.mulf %51, %26 : vector<3x16x16xf32>
      %53 = arith.addf %46, %52 : vector<3x16x16xf32>
      %54 = arith.addf %53, %49 : vector<3x16x16xf32>
      %c1_i32_37 = arith.constant 1 : i32
      %55 = tpu.dynamic_rotate %50 by %c1_i32_37 dim 1 : vector<3x16x16xf32>, i32 -> vector<3x16x16xf32>
      %cst_38 = arith.constant 0.000000e+00 : f32
      %56 = vector.broadcast %cst_38 : f32 to vector<3x16x16xf32>
      %57 = arith.select %41, %55, %56 : vector<3x16x16xi1>, vector<3x16x16xf32>
      %c15_i32_39 = arith.constant 15 : i32
      %58 = tpu.dynamic_rotate %50 by %c15_i32_39 dim 1 : vector<3x16x16xf32>, i32 -> vector<3x16x16xf32>
      %cst_40 = arith.constant 0.000000e+00 : f32
      %59 = vector.broadcast %cst_40 : f32 to vector<3x16x16xf32>
      %60 = arith.select %43, %58, %59 : vector<3x16x16xi1>, vector<3x16x16xf32>
      %c1_i32_41 = arith.constant 1 : i32
      %61 = tpu.dynamic_rotate %54 by %c1_i32_41 dim 1 : vector<3x16x16xf32>, i32 -> vector<3x16x16xf32>
      %cst_42 = arith.constant 0.000000e+00 : f32
      %62 = vector.broadcast %cst_42 : f32 to vector<3x16x16xf32>
      %63 = arith.select %41, %61, %62 : vector<3x16x16xi1>, vector<3x16x16xf32>
      %c15_i32_43 = arith.constant 15 : i32
      %64 = tpu.dynamic_rotate %54 by %c15_i32_43 dim 1 : vector<3x16x16xf32>, i32 -> vector<3x16x16xf32>
      %cst_44 = arith.constant 0.000000e+00 : f32
      %65 = vector.broadcast %cst_44 : f32 to vector<3x16x16xf32>
      %66 = arith.select %43, %64, %65 : vector<3x16x16xi1>, vector<3x16x16xf32>
      %cst_45 = arith.constant 2.000000e+00 : f32
      %67 = vector.broadcast %cst_45 : f32 to vector<3x16x16xf32>
      %68 = arith.mulf %67, %50 : vector<3x16x16xf32>
      %69 = arith.addf %57, %68 : vector<3x16x16xf32>
      %70 = arith.addf %69, %60 : vector<3x16x16xf32>
      %71 = arith.subf %66, %63 : vector<3x16x16xf32>
      %72 = arith.mulf %70, %70 : vector<3x16x16xf32>
      %73 = arith.mulf %71, %71 : vector<3x16x16xf32>
      %74 = arith.addf %72, %73 : vector<3x16x16xf32>
      %cst_46 = arith.constant 9.99999993E-9 : f32
      %75 = vector.broadcast %cst_46 : f32 to vector<3x16x16xf32>
      %76 = arith.addf %74, %75 : vector<3x16x16xf32>
      %77 = math.sqrt %76 : vector<3x16x16xf32>
      %c1_i32_47 = arith.constant 1 : i32
      %78 = tpu.dynamic_rotate %29 by %c1_i32_47 dim 2 : vector<3x16x16xf32>, i32 -> vector<3x16x16xf32>
      %cst_48 = arith.constant 0.000000e+00 : f32
      %79 = vector.broadcast %cst_48 : f32 to vector<3x16x16xf32>
      %80 = arith.select %37, %78, %79 : vector<3x16x16xi1>, vector<3x16x16xf32>
      %c15_i32_49 = arith.constant 15 : i32
      %81 = tpu.dynamic_rotate %29 by %c15_i32_49 dim 2 : vector<3x16x16xf32>, i32 -> vector<3x16x16xf32>
      %cst_50 = arith.constant 0.000000e+00 : f32
      %82 = vector.broadcast %cst_50 : f32 to vector<3x16x16xf32>
      %83 = arith.select %39, %81, %82 : vector<3x16x16xi1>, vector<3x16x16xf32>
      %84 = arith.subf %83, %80 : vector<3x16x16xf32>
      %cst_51 = arith.constant 2.000000e+00 : f32
      %85 = vector.broadcast %cst_51 : f32 to vector<3x16x16xf32>
      %86 = arith.mulf %85, %29 : vector<3x16x16xf32>
      %87 = arith.addf %80, %86 : vector<3x16x16xf32>
      %88 = arith.addf %87, %83 : vector<3x16x16xf32>
      %c1_i32_52 = arith.constant 1 : i32
      %89 = tpu.dynamic_rotate %84 by %c1_i32_52 dim 1 : vector<3x16x16xf32>, i32 -> vector<3x16x16xf32>
      %cst_53 = arith.constant 0.000000e+00 : f32
      %90 = vector.broadcast %cst_53 : f32 to vector<3x16x16xf32>
      %91 = arith.select %41, %89, %90 : vector<3x16x16xi1>, vector<3x16x16xf32>
      %c15_i32_54 = arith.constant 15 : i32
      %92 = tpu.dynamic_rotate %84 by %c15_i32_54 dim 1 : vector<3x16x16xf32>, i32 -> vector<3x16x16xf32>
      %cst_55 = arith.constant 0.000000e+00 : f32
      %93 = vector.broadcast %cst_55 : f32 to vector<3x16x16xf32>
      %94 = arith.select %43, %92, %93 : vector<3x16x16xi1>, vector<3x16x16xf32>
      %c1_i32_56 = arith.constant 1 : i32
      %95 = tpu.dynamic_rotate %88 by %c1_i32_56 dim 1 : vector<3x16x16xf32>, i32 -> vector<3x16x16xf32>
      %cst_57 = arith.constant 0.000000e+00 : f32
      %96 = vector.broadcast %cst_57 : f32 to vector<3x16x16xf32>
      %97 = arith.select %41, %95, %96 : vector<3x16x16xi1>, vector<3x16x16xf32>
      %c15_i32_58 = arith.constant 15 : i32
      %98 = tpu.dynamic_rotate %88 by %c15_i32_58 dim 1 : vector<3x16x16xf32>, i32 -> vector<3x16x16xf32>
      %cst_59 = arith.constant 0.000000e+00 : f32
      %99 = vector.broadcast %cst_59 : f32 to vector<3x16x16xf32>
      %100 = arith.select %43, %98, %99 : vector<3x16x16xi1>, vector<3x16x16xf32>
      %cst_60 = arith.constant 2.000000e+00 : f32
      %101 = vector.broadcast %cst_60 : f32 to vector<3x16x16xf32>
      %102 = arith.mulf %101, %84 : vector<3x16x16xf32>
      %103 = arith.addf %91, %102 : vector<3x16x16xf32>
      %104 = arith.addf %103, %94 : vector<3x16x16xf32>
      %105 = arith.subf %100, %97 : vector<3x16x16xf32>
      %106 = arith.mulf %104, %104 : vector<3x16x16xf32>
      %107 = arith.mulf %105, %105 : vector<3x16x16xf32>
      %108 = arith.addf %106, %107 : vector<3x16x16xf32>
      %cst_61 = arith.constant 9.99999993E-9 : f32
      %109 = vector.broadcast %cst_61 : f32 to vector<3x16x16xf32>
      %110 = arith.addf %108, %109 : vector<3x16x16xf32>
      %111 = math.sqrt %110 : vector<3x16x16xf32>
      %c0_62 = arith.constant 0 : index
      %c0_63 = arith.constant 0 : index
      %112 = vector.load %arg11[%c0_62, %c0_63] : memref<16x16xf32, #tpu.memory_space<vmem>>, vector<16x16xf32>
      %113 = arith.subf %111, %77 : vector<3x16x16xf32>
      %114 = math.absf %113 : vector<3x16x16xf32>
      %cst_64 = arith.constant dense<0.000000e+00> : vector<16x16xf32>
      %115 = vector.multi_reduction <add>, %114, %cst_64 [0] : vector<3x16x16xf32> to vector<16x16xf32>
      %116 = arith.addf %112, %115 : vector<16x16xf32>
      %c0_65 = arith.constant 0 : index
      %c0_66 = arith.constant 0 : index
      %117 = vector.load %arg11[%c0_65, %c0_66] : memref<16x16xf32, #tpu.memory_space<vmem>>, vector<16x16xf32>
      tpu.vector_store %arg11[%c0_65, %c0_66], %116 {strides = array<i32>} : memref<16x16xf32, #tpu.memory_space<vmem>>, vector<16x16xf32>,
      %c0_67 = arith.constant 0 : index
      %c0_68 = arith.constant 0 : index
      %118 = vector.load %arg8[%c0_67, %c0_68] : memref<8x256xf32, #tpu.memory_space<vmem>>, vector<8x256xf32>
      %119 = arith.mulf %118, %5 : vector<8x256xf32>
      %cst_69 = arith.constant dense<0.000000e+00> : vector<256xf32>
      %120 = vector.multi_reduction <add>, %119, %cst_69 [0] : vector<8x256xf32> to vector<256xf32>
      %121 = vector.shape_cast %120 : vector<256xf32> to vector<1x256xf32>
      %cst_70 = arith.constant dense<0.000000e+00> : vector<1xf32>
      %122 = vector.multi_reduction <add>, %121, %cst_70 [1] : vector<1x256xf32> to vector<1xf32>
      %123 = vector.shape_cast %122 : vector<1xf32> to vector<1x1xf32>
      %c0_71 = arith.constant 0 : index
      %c0_72 = arith.constant 0 : index
      %124 = vector.load %arg9[%c0_71, %c0_72] : memref<1x1xf32, #tpu.memory_space<vmem>>, vector<1x1xf32>
      %125 = arith.mulf %124, %11 : vector<1x1xf32>
      %cst_73 = arith.constant 9.99999993E-9 : f32
      %126 = vector.broadcast %cst_73 : f32 to vector<1x1xf32>
      %127 = arith.maximumf %125, %126 : vector<1x1xf32>
      %c0_74 = arith.constant 0 : index
      %c0_75 = arith.constant 0 : index
      %128 = vector.load %arg12[%c0_74, %c0_75] : memref<1x1xf32, #tpu.memory_space<vmem>>, vector<1x1xf32>
      %129 = arith.divf %123, %127 : vector<1x1xf32>
      %cst_76 = arith.constant 1.000000e+00 : f32
      %130 = vector.broadcast %cst_76 : f32 to vector<1x1xf32>
      %131 = arith.subf %130, %129 : vector<1x1xf32>
      %132 = arith.addf %128, %131 : vector<1x1xf32>
      %c0_77 = arith.constant 0 : index
      %c0_78 = arith.constant 0 : index
      %133 = vector.load %arg12[%c0_77, %c0_78] : memref<1x1xf32, #tpu.memory_space<vmem>>, vector<1x1xf32>
      tpu.vector_store %arg12[%c0_77, %c0_78], %132 {strides = array<i32>} : memref<1x1xf32, #tpu.memory_space<vmem>>, vector<1x1xf32>,
    } else {
    }
    %c3_i32 = arith.constant 3 : i32
    %18 = arith.cmpi slt, %arg1, %c3_i32 : i32
    %19 = arith.extui %18 : i1 to i32
    %c0_i32_17 = arith.constant 0 : i32
    %20 = arith.cmpi ne, %19, %c0_i32_17 : i32
    scf.if %20 {
      %c0_20 = arith.constant 0 : index
      %c0_21 = arith.constant 0 : index
      %c0_22 = arith.constant 0 : index
      %c0_23 = arith.constant 0 : index
      %c0_24 = arith.constant 0 : index
      %24 = vector.load %arg2[%c0_20, %c0_21, %c0_22, %c0_23, %c0_24] : memref<1x1x3x16x16xf32, #tpu.memory_space<vmem>>, vector<1x1x3x16x16xf32>
      %25 = vector.shape_cast %24 : vector<1x1x3x16x16xf32> to vector<3x16x16xf32>
      %c0_25 = arith.constant 0 : index
      %c0_26 = arith.constant 0 : index
      %c0_27 = arith.constant 0 : index
      %26 = vector.load %arg6[%c0_25, %c0_26, %c0_27] : memref<3x16x16xf32, #tpu.memory_space<vmem>>, vector<3x16x16xf32>
      tpu.vector_store %arg6[%c0_25, %c0_26, %c0_27], %25 {strides = array<i32>} : memref<3x16x16xf32, #tpu.memory_space<vmem>>, vector<3x16x16xf32>,
      %c0_28 = arith.constant 0 : index
      %c0_29 = arith.constant 0 : index
      %c0_30 = arith.constant 0 : index
      %c0_31 = arith.constant 0 : index
      %c0_32 = arith.constant 0 : index
      %27 = vector.load %arg3[%c0_28, %c0_29, %c0_30, %c0_31, %c0_32] : memref<1x1x3x16x16xf32, #tpu.memory_space<vmem>>, vector<1x1x3x16x16xf32>
      %28 = vector.shape_cast %27 : vector<1x1x3x16x16xf32> to vector<3x16x16xf32>
      %c0_33 = arith.constant 0 : index
      %c0_34 = arith.constant 0 : index
      %c0_35 = arith.constant 0 : index
      %29 = vector.load %arg7[%c0_33, %c0_34, %c0_35] : memref<3x16x16xf32, #tpu.memory_space<vmem>>, vector<3x16x16xf32>
      tpu.vector_store %arg7[%c0_33, %c0_34, %c0_35], %28 {strides = array<i32>} : memref<3x16x16xf32, #tpu.memory_space<vmem>>, vector<3x16x16xf32>,
      %c0_36 = arith.constant 0 : index
      %c0_37 = arith.constant 0 : index
      %c0_38 = arith.constant 0 : index
      %c0_39 = arith.constant 0 : index
      %30 = vector.load %arg4[%c0_36, %c0_37, %c0_38, %c0_39] : memref<1x1x8x256xf32, #tpu.memory_space<vmem>>, vector<1x1x8x256xf32>
      %31 = vector.shape_cast %30 : vector<1x1x8x256xf32> to vector<8x256xf32>
      %c0_40 = arith.constant 0 : index
      %c0_41 = arith.constant 0 : index
      %32 = vector.load %arg8[%c0_40, %c0_41] : memref<8x256xf32, #tpu.memory_space<vmem>>, vector<8x256xf32>
      tpu.vector_store %arg8[%c0_40, %c0_41], %31 {strides = array<i32>} : memref<8x256xf32, #tpu.memory_space<vmem>>, vector<8x256xf32>,
      %c0_42 = arith.constant 0 : index
      %c0_43 = arith.constant 0 : index
      %33 = vector.load %arg9[%c0_42, %c0_43] : memref<1x1xf32, #tpu.memory_space<vmem>>, vector<1x1xf32>
      tpu.vector_store %arg9[%c0_42, %c0_43], %11 {strides = array<i32>} : memref<1x1xf32, #tpu.memory_space<vmem>>, vector<1x1xf32>,
    } else {
    }
    %c3_i32_18 = arith.constant 3 : i32
    %21 = arith.cmpi eq, %arg1, %c3_i32_18 : i32
    %22 = arith.extui %21 : i1 to i32
    %c0_i32_19 = arith.constant 0 : i32
    %23 = arith.cmpi ne, %22, %c0_i32_19 : i32
    scf.if %23 {
      %c0_20 = arith.constant 0 : index
      %c0_21 = arith.constant 0 : index
      %24 = vector.load %arg10[%c0_20, %c0_21] : memref<16x16xf32, #tpu.memory_space<vmem>>, vector<16x16xf32>
      %25 = vector.shape_cast %24 : vector<16x16xf32> to vector<1x16x16xf32>
      %cst_22 = arith.constant dense<0.000000e+00> : vector<1xf32>
      %26 = vector.multi_reduction <add>, %25, %cst_22 [1, 2] : vector<1x16x16xf32> to vector<1xf32>
      %27 = vector.shape_cast %26 : vector<1xf32> to vector<1x1x1xf32>
      %28 = vector.extract %27[0, 0, 0] : f32 from vector<1x1x1xf32>
      %c0_23 = arith.constant 0 : index
      %c0_24 = arith.constant 0 : index
      %29 = vector.load %arg11[%c0_23, %c0_24] : memref<16x16xf32, #tpu.memory_space<vmem>>, vector<16x16xf32>
      %30 = vector.shape_cast %29 : vector<16x16xf32> to vector<1x16x16xf32>
      %cst_25 = arith.constant dense<0.000000e+00> : vector<1xf32>
      %31 = vector.multi_reduction <add>, %30, %cst_25 [1, 2] : vector<1x16x16xf32> to vector<1xf32>
      %32 = vector.shape_cast %31 : vector<1xf32> to vector<1x1x1xf32>
      %33 = vector.extract %32[0, 0, 0] : f32 from vector<1x1x1xf32>
      %c0_26 = arith.constant 0 : index
      %c0_27 = arith.constant 0 : index
      %34 = vector.load %arg12[%c0_26, %c0_27] : memref<1x1xf32, #tpu.memory_space<vmem>>, vector<1x1xf32>
      %35 = vector.shape_cast %34 : vector<1x1xf32> to vector<1x1x1xf32>
      %cst_28 = arith.constant dense<0.000000e+00> : vector<1xf32>
      %36 = vector.multi_reduction <add>, %35, %cst_28 [1, 2] : vector<1x1x1xf32> to vector<1xf32>
      %37 = vector.shape_cast %36 : vector<1xf32> to vector<1x1x1xf32>
      %38 = vector.extract %37[0, 0, 0] : f32 from vector<1x1x1xf32>
      %39 = tpu.iota {dimensions = array<i32: 1>} : vector<8x128xi32>
      %c0_i32_29 = arith.constant 0 : i32
      %40 = vector.broadcast %c0_i32_29 : i32 to vector<8x128xi32>
      %41 = arith.cmpi eq, %39, %40 : vector<8x128xi32>
      %cst_30 = arith.constant 0.000000e+00 : f32
      %42 = vector.broadcast %28 : f32 to vector<8x128xf32>
      %43 = vector.broadcast %cst_30 : f32 to vector<8x128xf32>
      %44 = arith.select %41, %42, %43 : vector<8x128xi1>, vector<8x128xf32>
      %c1_i32 = arith.constant 1 : i32
      %45 = vector.broadcast %c1_i32 : i32 to vector<8x128xi32>
      %46 = arith.cmpi eq, %39, %45 : vector<8x128xi32>
      %cst_31 = arith.constant 0.000000e+00 : f32
      %47 = vector.broadcast %33 : f32 to vector<8x128xf32>
      %48 = vector.broadcast %cst_31 : f32 to vector<8x128xf32>
      %49 = arith.select %46, %47, %48 : vector<8x128xi1>, vector<8x128xf32>
      %50 = arith.addf %44, %49 : vector<8x128xf32>
      %c2_i32 = arith.constant 2 : i32
      %51 = vector.broadcast %c2_i32 : i32 to vector<8x128xi32>
      %52 = arith.cmpi eq, %39, %51 : vector<8x128xi32>
      %cst_32 = arith.constant 0.000000e+00 : f32
      %53 = vector.broadcast %38 : f32 to vector<8x128xf32>
      %54 = vector.broadcast %cst_32 : f32 to vector<8x128xf32>
      %55 = arith.select %52, %53, %54 : vector<8x128xi1>, vector<8x128xf32>
      %56 = arith.addf %50, %55 : vector<8x128xf32>
      %c0_33 = arith.constant 0 : index
      %c0_34 = arith.constant 0 : index
      %c0_35 = arith.constant 0 : index
      %57 = vector.load %arg5[%c0_33, %c0_34, %c0_35] : memref<1x8x128xf32, #tpu.memory_space<vmem>>, vector<1x8x128xf32>
      %58 = vector.shape_cast %57 : vector<1x8x128xf32> to vector<8x128xf32>
      %59 = vector.shape_cast %56 : vector<8x128xf32> to vector<1x8x128xf32>
      tpu.vector_store %arg5[%c0_33, %c0_34, %c0_35], %59 {strides = array<i32>} : memref<1x8x128xf32, #tpu.memory_space<vmem>>, vector<1x8x128xf32>,
    } else {
    }
    return
  }
  func.func @transform_0(%arg0: i32, %arg1: i32) -> (i32, i32, i32, i32, i32) {
    %c0_i32 = arith.constant 0 : i32
    %c0_i32_0 = arith.constant 0 : i32
    %c0_i32_1 = arith.constant 0 : i32
    %c0_i32_2 = arith.constant 0 : i32
    return %arg0, %arg1, %c0_i32, %c0_i32_0, %c0_i32_1 : i32, i32, i32, i32, i32
  }
  func.func @transform_1(%arg0: i32, %arg1: i32) -> (i32, i32, i32, i32, i32) {
    %c0_i32 = arith.constant 0 : i32
    %c0_i32_0 = arith.constant 0 : i32
    %c0_i32_1 = arith.constant 0 : i32
    %c0_i32_2 = arith.constant 0 : i32
    return %arg0, %arg1, %c0_i32, %c0_i32_0, %c0_i32_1 : i32, i32, i32, i32, i32
  }
  func.func @transform_2(%arg0: i32, %arg1: i32) -> (i32, i32, i32, i32) {
    %c0_i32 = arith.constant 0 : i32
    %c0_i32_0 = arith.constant 0 : i32
    %c0_i32_1 = arith.constant 0 : i32
    return %arg0, %arg1, %c0_i32, %c0_i32_0 : i32, i32, i32, i32
  }
  func.func @transform_3(%arg0: i32, %arg1: i32) -> (i32, i32, i32) {
    %c0_i32 = arith.constant 0 : i32
    %c0_i32_0 = arith.constant 0 : i32
    %c0_i32_1 = arith.constant 0 : i32
    return %arg0, %c0_i32, %c0_i32_0 : i32, i32, i32
  }
}

</mosaic_0001>

<llo_original>
// kernel: tpu_custom_call.1
$region0: #{tpu_custom_call.1}
  #allocation0 [shape = 'u32[]', space=smem, size = 0x4, offset = 0x4, fixed_abs, tag = 'smem constant byte address 0x4 - core index']
  #allocation1 [shape = 'u32[72,128]{1,0:T(1,128)}', space=vmem, size = 0x9000, scoped, tag = 'internal scratch']
  #allocation2 [shape = 'f32[3,16,16]{2,1,0:T(8,128)}', space=vmem, size = 0x6000, scoped, tag = 'scratch operand']
  #allocation3 [shape = 'f32[3,16,16]{2,1,0:T(8,128)}', space=vmem, size = 0x6000, scoped, tag = 'scratch operand']
  #allocation4 [shape = 'f32[8,256]{1,0:T(8,128)}', space=vmem, size = 0x2000, scoped, tag = 'scratch operand']
  #allocation5 [shape = 'f32[1,1]{1,0:T(1,128)}', space=vmem, size = 0x200, scoped, tag = 'scratch operand']
  #allocation6 [shape = 'f32[16,16]{1,0:T(8,128)}', space=vmem, size = 0x2000, scoped, tag = 'scratch operand']
  #allocation7 [shape = 'f32[16,16]{1,0:T(8,128)}', space=vmem, size = 0x2000, scoped, tag = 'scratch operand']
  #allocation8 [shape = 'f32[1,1]{1,0:T(1,128)}', space=vmem, size = 0x200, scoped, tag = 'scratch operand']
  %s0 = inlined_call_operand.hbm [shape: f32[2,4,3,16,16], index: 0, kind: input, shape index: {}]
  %s1 = inlined_call_operand.hbm [shape: f32[2,4,3,16,16], index: 1, kind: input, shape index: {}]
  %s2 = inlined_call_operand.hbm [shape: f32[2,4,8,256], index: 2, kind: input, shape index: {}]
  %s3 = inlined_call_operand.hbm [shape: f32[2,8,128], index: 3, kind: output, shape index: {}]
  %s4 = sld [smem:[#allocation0]]
  $region73: #{tpu_custom_call.1} parent=0
    _
  %s6 = ssub.s32 1, %s4
  %s7 = scalar_select 0, %s6, %s4
  $region1: #{tpu_custom_call.1} parent=0
    #allocation9 [shape = 'u8[49152]{0}', space=vmem, size = 0xc000, scoped, tag = 'input window, operand 0']
    #allocation10 [shape = 's32[2]{0}', space=sflag, size = 0x8, scoped, tag = 'scoped memory for tpu_custom_call.1']
    #allocation11 [shape = 's32[2]{0}', space=sflag, size = 0x8, scoped, tag = 'scoped memory for tpu_custom_call.1']
    #allocation12 [shape = 'u8[49152]{0}', space=vmem, size = 0xc000, scoped, tag = 'input window, operand 1']
    #allocation13 [shape = 's32[2]{0}', space=sflag, size = 0x8, scoped, tag = 'scoped memory for tpu_custom_call.1']
    #allocation14 [shape = 'u8[16384]{0}', space=vmem, size = 0x4000, scoped, tag = 'input window, operand 2']
    #allocation15 [shape = 'u8[8192]{0}', space=vmem, size = 0x2000, scoped, tag = 'output window, operand 0']
    %8 = vsyncpa [#allocation10], 0
    %s9 = scalar_lea.sflag [#allocation10], 1
    %10 = vsyncpa %s9, 0
    %11 = vsyncpa [#allocation13], 0
    %s12 = scalar_lea.sflag [#allocation13], 1
    %13 = vsyncpa %s12, 0
    %14 = vsyncpa [#allocation11], 0
    %s15 = scalar_lea.sflag [#allocation11], 1
    %16 = vsyncpa %s15, 0
    loop: start=0, step=1, limit=10
    $region2: #{tpu_custom_call.1} parent=1 // loop_pre_header
      _
    $region3: #{tpu_custom_call.1} parent=1 // loop_header
      %s18 = sphi 0, %s22
      %p19 = scmp.ge.s32.totalorder %s18, 10
      %s25 = sphi 0, %s37
      %s26 = sphi 0, %s33
      %s27 = sphi 0, %s25
      %s28 = sphi 0, %s26
      %s29 = sphi 0, %s27
      %s30 = sphi 0, %s28
      %s42 = sphi 0, %s44
      %s45 = sphi 0, %s42
      %s46 = sphi 0, %s45
      %s62 = sphi 0, %s46
      %s70 = sphi 0, %s72
      %s73 = sphi 0, %s70
      %s74 = sphi 0, %s73
      %s90 = sphi 0, %s74
      %s98 = sphi 0, %s100
      %s101 = sphi 0, %s98
      %s102 = sphi 0, %s101
      %s118 = sphi 0, %s102
      %s124 = sphi 0, %s126
      %s127 = sphi 0, %s124
      %s128 = sphi 0, %s127
      %s144 = sphi 0, %s128
    $region4: #{tpu_custom_call.1} parent=1 // loop_header_branch
      %21 = sbr.rel (%p19) target = $region8
    $region5: #{tpu_custom_call.1} parent=1 // loop_body
      %s23 = ssub.s32 %s18, 1
      %s24 = ssub.s32 %s18, 2
      %s31 = sadd.s32 1, %s26
      %p32 = scmp.ge.s32.totalorder %s31, 4
      %s33 = scalar_select %p32, 0, %s31
      %s34 = sadd.s32 1, %s25
      %s35 = scalar_select %p32, %s34, %s25
      %p36 = scmp.ge.s32.totalorder %s35, 2
      %s37 = scalar_select %p36, 0, %s35
      %s38 = ssub.s32 %s25, %s37
      %s39 = ssub.s32 %s26, %s33
      %s40 = sor.u32 %s38, %s39
      %p41 = scmp.eq.s32.totalorder %s40, 0
      %s43 = sadd.s32 %s42, 1
      %s44 = scalar_select %p41, %s42, %s43
      %p47 = pneg %p41
      %p48 = scmp.eq.s32.totalorder %s18, 7
      %p49 = por %p47, %p48
      %p50 = scmp.ne.s32.totalorder %s42, %s45
      %p51 = scmp.eq.s32.totalorder %s18, 0
      %p52 = por %p50, %p51
      %p53 = scmp.ne.s32.totalorder %s42, %s45
      %p54 = scmp.eq.s32.totalorder %s23, 7
      %p55 = por %p53, %p54
      %p56 = scmp.ne.s32.totalorder %s45, %s46
      %p57 = scmp.eq.s32.totalorder %s23, 0
      %p58 = por %p56, %p57
      %p59 = scmp.ne.s32.totalorder %s45, %s46
      %p60 = scmp.eq.s32.totalorder %s24, 7
      %p61 = por %p59, %p60
      %p63 = scmp.ne.s32.totalorder %s46, %s62
      %p64 = scmp.eq.s32.totalorder %s24, 0
      %p65 = por %p63, %p64
      %s66 = ssub.s32 %s25, %s37
      %s67 = ssub.s32 %s26, %s33
      %s68 = sor.u32 %s66, %s67
      %p69 = scmp.eq.s32.totalorder %s68, 0
      %s71 = sadd.s32 %s70, 1
      %s72 = scalar_select %p69, %s70, %s71
      %p75 = pneg %p69
      %p76 = scmp.eq.s32.totalorder %s18, 7
      %p77 = por %p75, %p76
      %p78 = scmp.ne.s32.totalorder %s70, %s73
      %p79 = scmp.eq.s32.totalorder %s18, 0
      %p80 = por %p78, %p79
      %p81 = scmp.ne.s32.totalorder %s70, %s73
      %p82 = scmp.eq.s32.totalorder %s23, 7
      %p83 = por %p81, %p82
      %p84 = scmp.ne.s32.totalorder %s73, %s74
      %p85 = scmp.eq.s32.totalorder %s23, 0
      %p86 = por %p84, %p85
      %p87 = scmp.ne.s32.totalorder %s73, %s74
      %p88 = scmp.eq.s32.totalorder %s24, 7
      %p89 = por %p87, %p88
      %p91 = scmp.ne.s32.totalorder %s74, %s90
      %p92 = scmp.eq.s32.totalorder %s24, 0
      %p93 = por %p91, %p92
      %s94 = ssub.s32 %s25, %s37
      %s95 = ssub.s32 %s26, %s33
      %s96 = sor.u32 %s94, %s95
      %p97 = scmp.eq.s32.totalorder %s96, 0
      %s99 = sadd.s32 %s98, 1
      %s100 = scalar_select %p97, %s98, %s99
      %p103 = pneg %p97
      %p104 = scmp.eq.s32.totalorder %s18, 7
      %p105 = por %p103, %p104
      %p106 = scmp.ne.s32.totalorder %s98, %s101
      %p107 = scmp.eq.s32.totalorder %s18, 0
      %p108 = por %p106, %p107
      %p109 = scmp.ne.s32.totalorder %s98, %s101
      %p110 = scmp.eq.s32.totalorder %s23, 7
      %p111 = por %p109, %p110
      %p112 = scmp.ne.s32.totalorder %s101, %s102
      %p113 = scmp.eq.s32.totalorder %s23, 0
      %p114 = por %p112, %p113
      %p115 = scmp.ne.s32.totalorder %s101, %s102
      %p116 = scmp.eq.s32.totalorder %s24, 7
      %p117 = por %p115, %p116
      %p119 = scmp.ne.s32.totalorder %s102, %s118
      %p120 = scmp.eq.s32.totalorder %s24, 0
      %p121 = por %p119, %p120
      %s122 = ssub.s32 %s25, %s37
      %p123 = scmp.eq.s32.totalorder %s122, 0
      %s125 = sadd.s32 %s124, 1
      %s126 = scalar_select %p123, %s124, %s125
      %p129 = pneg %p123
      %p130 = scmp.eq.s32.totalorder %s18, 7
      %p131 = por %p129, %p130
      %p132 = scmp.ne.s32.totalorder %s124, %s127
      %p133 = scmp.eq.s32.totalorder %s18, 0
      %p134 = por %p132, %p133
      %p135 = scmp.ne.s32.totalorder %s124, %s127
      %p136 = scmp.eq.s32.totalorder %s23, 7
      %p137 = por %p135, %p136
      %p138 = scmp.ne.s32.totalorder %s127, %s128
      %p139 = scmp.eq.s32.totalorder %s23, 0
      %p140 = por %p138, %p139
      %p141 = scmp.ne.s32.totalorder %s127, %s128
      %p142 = scmp.eq.s32.totalorder %s24, 7
      %p143 = por %p141, %p142
      %p145 = scmp.ne.s32.totalorder %s128, %s144
      %p146 = scmp.eq.s32.totalorder %s24, 0
      %p147 = por %p145, %p146
      %p148 = scmp.le.s32.totalorder 1, %s18
      %p149 = scmp.lt.s32.totalorder %s18, 9
      %p150 = pnand %p148, %p149
      %p151 = pneg %p150
      // Predicated region
      $region9: #{tpu_custom_call.1} parent=5 // pred_check
        _
      $region10: #{tpu_custom_call.1} parent=5 // pred_check_branch
        %153 = sbr.rel (%p150) target = $region12
      $region11: #{tpu_custom_call.1} parent=5 // pred_region
        %s154 = ssub.s32 %s18, 1
      $region12: #{tpu_custom_call.1} parent=5 // pred_fallthru
        _
      %p155 = scmp.lt.s32.totalorder %s18, 8
      // Predicated region
      $region13: #{tpu_custom_call.1} parent=5 // pred_check
        %p156 = pneg %p155
      $region14: #{tpu_custom_call.1} parent=5 // pred_check_branch
        %158 = sbr.rel (%p156) target = $region16
      $region15: #{tpu_custom_call.1} parent=5 // pred_region
        // Predicated region
        $region17: #{tpu_custom_call.1} parent=15 // pred_check
          %p159 = pneg %p52
        $region18: #{tpu_custom_call.1} parent=15 // pred_check_branch
          %161 = sbr.rel (%p159) target = $region20
        $region19: #{tpu_custom_call.1} parent=15 // pred_region
          %s162 = sand.u32 %s42, 1
          %s163 = scalar_lea.sflag [#allocation10], %s162
          %s164 = sand.u32 %s42, 1
          %s165 = smul.addr %s164, 48
          %s166 = scalar_lea.vmem [#allocation9], %s165
          %168 = vsyncadd %s163, 0
          %s169 = smul.addr %s26, 6
          %s170 = smul.addr %s25, 24
          %s171 = sadd.s32 %s169, %s170
          %s172 = smul.addr %s171, 8
          %s173 = scalar_lea.hbm %s0, %s172
          %s174 = sshll.u32 %s173, 4
          %s175 = int_to_ptr.hbm [resolvable:$true] %s174
          %s176 = sshll.u32 %s166, 4
          %s177 = int_to_ptr.vmem [resolvable:$true] %s176
          %182 = dma.hbm_to_vmem [thread:$0]  %s175, 768, %s177, %s163, 128, 128, 8
        $region20: #{tpu_custom_call.1} parent=15 // pred_fallthru
          _
        // Predicated region
        $region21: #{tpu_custom_call.1} parent=15 // pred_check
          %p183 = pneg %p80
        $region22: #{tpu_custom_call.1} parent=15 // pred_check_branch
          %185 = sbr.rel (%p183) target = $region24
        $region23: #{tpu_custom_call.1} parent=15 // pred_region
          %s186 = sand.u32 %s18, 1
          %s187 = scalar_lea.sflag [#allocation13], %s186
          %s188 = sand.u32 %s70, 1
          %s189 = smul.addr %s188, 48
          %s190 = scalar_lea.vmem [#allocation12], %s189
          %192 = vsyncadd %s187, 0
          %s193 = smul.addr %s26, 6
          %s194 = smul.addr %s25, 24
          %s195 = sadd.s32 %s193, %s194
          %s196 = smul.addr %s195, 8
          %s197 = scalar_lea.hbm %s1, %s196
          %s198 = sshll.u32 %s197, 4
          %s199 = int_to_ptr.hbm [resolvable:$true] %s198
          %s200 = sshll.u32 %s190, 4
          %s201 = int_to_ptr.vmem [resolvable:$true] %s200
          %206 = dma.hbm_to_vmem [thread:$0]  %s199, 768, %s201, %s187, 128, 128, 8
        $region24: #{tpu_custom_call.1} parent=15 // pred_fallthru
          _
        // Predicated region
        $region25: #{tpu_custom_call.1} parent=15 // pred_check
          %p207 = pneg %p108
        $region26: #{tpu_custom_call.1} parent=15 // pred_check_branch
          %209 = sbr.rel (%p207) target = $region28
        $region27: #{tpu_custom_call.1} parent=15 // pred_region
          %s210 = sand.u32 %s18, 1
          %s211 = scalar_lea.sflag [#allocation13], %s210
          %s212 = sand.u32 %s98, 1
          %s213 = smul.addr %s212, 16
          %s214 = scalar_lea.vmem [#allocation14], %s213
          %216 = vsyncadd %s211, 0
          %s217 = smul.addr %s26, 2
          %s218 = smul.addr %s25, 8
          %s219 = sadd.s32 %s217, %s218
          %s220 = smul.addr %s219, 8
          %s221 = scalar_lea.hbm %s2, %s220
          %s223 = sshll.u32 %s221, 4
          %s224 = int_to_ptr.hbm [resolvable:$true] %s223
          %s225 = sshll.u32 %s214, 4
          %s226 = int_to_ptr.vmem [resolvable:$true] %s225
          %228 = dma.hbm_to_vmem [thread:$0]  %s224, 256, %s226, %s211
        $region28: #{tpu_custom_call.1} parent=15 // pred_fallthru
          _
      $region16: #{tpu_custom_call.1} parent=5 // pred_fallthru
        _
      %p229 = scmp.le.s32.totalorder 1, %s18
      %p230 = scmp.lt.s32.totalorder %s18, 9
      %p231 = pnand %p229, %p230
      %p232 = pneg %p231
      // Predicated region
      $region29: #{tpu_custom_call.1} parent=5 // pred_check
        _
      $region30: #{tpu_custom_call.1} parent=5 // pred_check_branch
        %234 = sbr.rel (%p231) target = $region32
      $region31: #{tpu_custom_call.1} parent=5 // pred_region
        %s235 = ssub.s32 %s18, 1
        %s236 = sand.u32 %s45, 1
        %s237 = scalar_lea.sflag [#allocation10], %s236
        %s238 = sand.u32 %s45, 1
        %s239 = smul.addr %s238, 48
        %s240 = scalar_lea.vmem [#allocation9], %s239
        // Predicated region
        $region33: #{tpu_custom_call.1} parent=31 // pred_check
          %p241 = pneg %p58
        $region34: #{tpu_custom_call.1} parent=31 // pred_check_branch
          %243 = sbr.rel (%p241) target = $region36
        $region35: #{tpu_custom_call.1} parent=31 // pred_region
          %245 = dma.done %s237, 768
        $region36: #{tpu_custom_call.1} parent=31 // pred_fallthru
          _
        %s246 = sand.u32 %s23, 1
        %s247 = scalar_lea.sflag [#allocation13], %s246
        %s248 = sand.u32 %s73, 1
        %s249 = smul.addr %s248, 48
        %s250 = scalar_lea.vmem [#allocation12], %s249
        // Predicated region
        $region37: #{tpu_custom_call.1} parent=31 // pred_check
          %p251 = pneg %p86
        $region38: #{tpu_custom_call.1} parent=31 // pred_check_branch
          %253 = sbr.rel (%p251) target = $region40
        $region39: #{tpu_custom_call.1} parent=31 // pred_region
          %255 = dma.done %s247, 768
        $region40: #{tpu_custom_call.1} parent=31 // pred_fallthru
          _
        %s256 = sand.u32 %s23, 1
        %s257 = scalar_lea.sflag [#allocation13], %s256
        %s258 = sand.u32 %s101, 1
        %s259 = smul.addr %s258, 16
        %s260 = scalar_lea.vmem [#allocation14], %s259
        // Predicated region
        $region41: #{tpu_custom_call.1} parent=31 // pred_check
          %p261 = pneg %p114
        $region42: #{tpu_custom_call.1} parent=31 // pred_check_branch
          %263 = sbr.rel (%p261) target = $region44
        $region43: #{tpu_custom_call.1} parent=31 // pred_region
          %265 = dma.done %s257, 256
        $region44: #{tpu_custom_call.1} parent=31 // pred_fallthru
          _
        %s266 = sand.u32 %s45, 1
        %s267 = scalar_lea.sflag [#allocation10], %s266
        %s268 = sand.u32 %s45, 1
        %s269 = smul.addr %s268, 48
        %s270 = scalar_lea.vmem [#allocation9], %s269
        %p271 = pneg %p58
        %p272 = pneg %p55
        %s273 = sand.u32 %s23, 1
        %s274 = scalar_lea.sflag [#allocation13], %s273
        %s275 = sand.u32 %s73, 1
        %s276 = smul.addr %s275, 48
        %s277 = scalar_lea.vmem [#allocation12], %s276
        %p278 = pneg %p86
        %p279 = pneg %p83
        %s280 = sand.u32 %s23, 1
        %s281 = scalar_lea.sflag [#allocation13], %s280
        %s282 = sand.u32 %s101, 1
        %s283 = smul.addr %s282, 16
        %s284 = scalar_lea.vmem [#allocation14], %s283
        %p285 = pneg %p114
        %p286 = pneg %p111
        %p287 = pneg %p140
        %p288 = pneg %p137
        %s289 = sand.u32 %s127, 1
        %s290 = scalar_lea.sflag [#allocation11], %s289
        %s291 = sand.u32 %s127, 1
        %s292 = smul.addr %s291, 8
        %s293 = scalar_lea.vmem [#allocation15], %s292
        %v294 = vld [vmem:[%s240] sm:$0xff]
        %v295 = vld [vmem:[%s240 + $0x8] sm:$0xff]
        %v296 = vld [vmem:[%s240 + $0x10] sm:$0xff]
        %v297 = vld [vmem:[%s240 + $0x18] sm:$0xff]
        %v298 = vld [vmem:[%s240 + $0x20] sm:$0xff]
        %v299 = vld [vmem:[%s240 + $0x28] sm:$0xff]
        %v300 = vld [vmem:[%s250] sm:$0xff]
        %v301 = vld [vmem:[%s250 + $0x8] sm:$0xff]
        %v302 = vld [vmem:[%s250 + $0x10] sm:$0xff]
        %v303 = vld [vmem:[%s250 + $0x18] sm:$0xff]
        %v304 = vld [vmem:[%s250 + $0x20] sm:$0xff]
        %v305 = vld [vmem:[%s250 + $0x28] sm:$0xff]
        %v306 = vld [vmem:[%s260] sm:$0xff]
        %v307 = vld [vmem:[%s260 + $0x8] sm:$0xff]
        %v308 = vmul.f32 %v306, %v306
        %v309 = vmul.f32 %v307, %v307
        %v310 = vrot.slane %v308, 4
        %v311 = vadd.f32 %v308, %v310
        %v312 = vrot.slane %v311, 2
        %v313 = vadd.f32 %v311, %v312
        %v314 = vrot.slane %v313, 1
        %v315 = vadd.f32 %v313, %v314
        %v316 = vrot.slane %v309, 4
        %v317 = vadd.f32 %v309, %v316
        %v318 = vrot.slane %v317, 2
        %v319 = vadd.f32 %v317, %v318
        %v320 = vrot.slane %v319, 1
        %v321 = vadd.f32 %v319, %v320
        %v322 = vadd.f32 %v315, %v321
        %323 = vadd.xlane.f32.xlu0 %v322
        %v324 = vpop.xlane.xlu0 %323
        %v325 = vrsqrt.pop %v324
        %v326 = vmul.f32 %v325, %v324
        %v327 = vmul.f32 %v326, %v325
        %v328 = vmul.f32 0.5, %v327
        %v329 = vsub.f32 1.5, %v328
        %v330 = vmul.f32 %v325, %v329
        %v331 = vmul.f32 %v324, %v330
        %vm332 = vcmp.eq.f32.partialorder %v324, inf
        %v333 = vsel %vm332, %v324, %v331
        %vm334 = vcmp.eq.f32.partialorder %v324, 0.0
        %v335 = vand.u32 %v324, 2147483648
        %v336 = vsel %vm334, %v335, %v333
        %p337 = scmp.eq.s32.totalorder %s28, 0
        // Predicated region
        $region45: #{tpu_custom_call.1} parent=31 // pred_check
          %p338 = pneg %p337
        $region46: #{tpu_custom_call.1} parent=31 // pred_check_branch
          %340 = sbr.rel (%p338) target = $region48
        $region47: #{tpu_custom_call.1} parent=31 // pred_region
          %vm341 = vcmask 130048
          %342 = vst.msk [vmem:[#allocation6] sm:$0xff] %vm341, 0.0
          %343 = vst.msk [vmem:[#allocation6 + $0x8] sm:$0xff] %vm341, 0.0
          %344 = vst.msk [vmem:[#allocation7] sm:$0xff] %vm341, 0.0
          %345 = vst.msk [vmem:[#allocation7 + $0x8] sm:$0xff] %vm341, 0.0
          %vm346 = vcmask 0
          %347 = vst.msk [vmem:[#allocation8] sm:$0x1] %vm346, 0.0
        $region48: #{tpu_custom_call.1} parent=31 // pred_fallthru
          _
        %p348 = scmp.gt.s32.totalorder %s28, 0
        // Predicated region
        $region49: #{tpu_custom_call.1} parent=31 // pred_check
          %p349 = pneg %p348
        $region50: #{tpu_custom_call.1} parent=31 // pred_check_branch
          %351 = sbr.rel (%p349) target = $region52
        $region51: #{tpu_custom_call.1} parent=31 // pred_region
          %v352 = vld [vmem:[#allocation3] sm:$0xff]
          %v353 = vld [vmem:[#allocation3 + $0x8] sm:$0xff]
          %v354 = vld [vmem:[#allocation3 + $0x10] sm:$0xff]
          %v355 = vld [vmem:[#allocation3 + $0x18] sm:$0xff]
          %v356 = vld [vmem:[#allocation3 + $0x20] sm:$0xff]
          %v357 = vld [vmem:[#allocation3 + $0x28] sm:$0xff]
          %v358 = vsub.f32 %v352, %v300
          %v359 = vsub.f32 %v353, %v301
          %v360 = vsub.f32 %v354, %v302
          %v361 = vsub.f32 %v355, %v303
          %v362 = vsub.f32 %v356, %v304
          %v363 = vsub.f32 %v357, %v305
          %v364 = vand.u32 2147483647, %v358
          %v365 = vand.u32 2147483647, %v359
          %v366 = vand.u32 2147483647, %v360
          %v367 = vand.u32 2147483647, %v361
          %v368 = vand.u32 2147483647, %v362
          %v369 = vand.u32 2147483647, %v363
          %v370 = vld [vmem:[#allocation2] sm:$0xff]
          %v371 = vld [vmem:[#allocation2 + $0x8] sm:$0xff]
          %v372 = vld [vmem:[#allocation2 + $0x10] sm:$0xff]
          %v373 = vld [vmem:[#allocation2 + $0x18] sm:$0xff]
          %v374 = vld [vmem:[#allocation2 + $0x20] sm:$0xff]
          %v375 = vld [vmem:[#allocation2 + $0x28] sm:$0xff]
          %v376 = vsub.f32 %v370, %v294
          %v377 = vsub.f32 %v371, %v295
          %v378 = vsub.f32 %v372, %v296
          %v379 = vsub.f32 %v373, %v297
          %v380 = vsub.f32 %v374, %v298
          %v381 = vsub.f32 %v375, %v299
          %v382 = vand.u32 2147483647, %v376
          %v383 = vand.u32 2147483647, %v377
          %v384 = vand.u32 2147483647, %v378
          %v385 = vand.u32 2147483647, %v379
          %v386 = vand.u32 2147483647, %v380
          %v387 = vand.u32 2147483647, %v381
          %v388 = vld [vmem:[#allocation6] sm:$0xff]
          %v389 = vld [vmem:[#allocation6 + $0x8] sm:$0xff]
          %vm390 = vcmask 130048
          %v391 = vsel %vm390, %v364, 0.0
          %v392 = vsel %vm390, %v366, 0.0
          %v393 = vadd.f32 %v391, %v392
          %v394 = vsel %vm390, %v368, 0.0
          %v395 = vadd.f32 %v393, %v394
          %v396 = vsel %vm390, %v365, 0.0
          %v397 = vsel %vm390, %v367, 0.0
          %v398 = vadd.f32 %v396, %v397
          %v399 = vsel %vm390, %v369, 0.0
          %v400 = vadd.f32 %v398, %v399
          %v401 = vadd.f32 %v388, %v395
          %v402 = vadd.f32 %v389, %v400
          %403 = vst.msk [vmem:[#allocation6] sm:$0xff] %vm390, %v401
          %404 = vst.msk [vmem:[#allocation6 + $0x8] sm:$0xff] %vm390, %v402
          %v405 = vlaneseq
          %v406 = vand.u32 %v405, 127
          %v407 = vlaneseq
          %v408 = vshrl.u32 %v407, 7
          %v409 = vadd.s32 %v408, 8
          %vm410 = vcmp.ge.s32.totalorder %v406, 1
          %vm411 = vcmp.le.s32.totalorder %v406, 14
          %vm412 = vcmp.ge.s32.totalorder %v408, 1
          %vm413 = vcmp.ge.s32.totalorder %v409, 1
          %vm414 = vcmp.le.s32.totalorder %v408, 14
          %vm415 = vcmp.le.s32.totalorder %v409, 14
          %vm416 = vcmask 1047680
          %417 = vrot.lane.b32.xlu0 %v364, 16
          %v418 = vpop.permute.xlu0 %417
          %v419 = vsel %vm416, %v418, %v364
          %420 = vrot.lane.b32.xlu0 %v365, 16
          %v421 = vpop.permute.xlu0 %420
          %v422 = vsel %vm416, %v421, %v365
          %423 = vrot.lane.b32.xlu0 %v366, 16
          %v424 = vpop.permute.xlu0 %423
          %v425 = vsel %vm416, %v424, %v366
          %426 = vrot.lane.b32.xlu0 %v367, 16
          %v427 = vpop.permute.xlu0 %426
          %v428 = vsel %vm416, %v427, %v367
          %429 = vrot.lane.b32.xlu0 %v368, 16
          %v430 = vpop.permute.xlu0 %429
          %v431 = vsel %vm416, %v430, %v368
          %432 = vrot.lane.b32.xlu0 %v369, 16
          %v433 = vpop.permute.xlu0 %432
          %v434 = vsel %vm416, %v433, %v369
          %435 = vrot.lane.b32.xlu0 %v419, 16
          %v436 = vpop.permute.xlu0 %435
          %437 = vrot.lane.b32.xlu0 %v422, 16
          %v438 = vpop.permute.xlu0 %437
          %439 = vrot.lane.b32.xlu0 %v425, 16
          %v440 = vpop.permute.xlu0 %439
          %441 = vrot.lane.b32.xlu0 %v428, 16
          %v442 = vpop.permute.xlu0 %441
          %443 = vrot.lane.b32.xlu0 %v431, 16
          %v444 = vpop.permute.xlu0 %443
          %445 = vrot.lane.b32.xlu0 %v434, 16
          %v446 = vpop.permute.xlu0 %445
          %v447 = vsel %vm416, %v436, %v364
          %v448 = vsel %vm416, %v438, %v365
          %v449 = vsel %vm416, %v440, %v366
          %v450 = vsel %vm416, %v442, %v367
          %v451 = vsel %vm416, %v444, %v368
          %v452 = vsel %vm416, %v446, %v369
          %459 = vrot.lane.b32.xlu0 %v447, 113
          %v460 = vpop.permute.xlu0 %459
          %461 = vrot.lane.b32.xlu0 %v448, 113
          %v462 = vpop.permute.xlu0 %461
          %463 = vrot.lane.b32.xlu0 %v449, 113
          %v464 = vpop.permute.xlu0 %463
          %465 = vrot.lane.b32.xlu0 %v450, 113
          %v466 = vpop.permute.xlu0 %465
          %467 = vrot.lane.b32.xlu0 %v451, 113
          %v468 = vpop.permute.xlu0 %467
          %469 = vrot.lane.b32.xlu0 %v452, 113
          %v470 = vpop.permute.xlu0 %469
          %v477 = vsel %vm410, %v460, 0.0
          %v478 = vsel %vm410, %v462, 0.0
          %v479 = vsel %vm410, %v464, 0.0
          %v480 = vsel %vm410, %v466, 0.0
          %v481 = vsel %vm410, %v468, 0.0
          %v482 = vsel %vm410, %v470, 0.0
          %483 = vrot.lane.b32.xlu0 %v447, 127
          %v484 = vpop.permute.xlu0 %483
          %485 = vrot.lane.b32.xlu0 %v448, 127
          %v486 = vpop.permute.xlu0 %485
          %487 = vrot.lane.b32.xlu0 %v449, 127
          %v488 = vpop.permute.xlu0 %487
          %489 = vrot.lane.b32.xlu0 %v450, 127
          %v490 = vpop.permute.xlu0 %489
          %491 = vrot.lane.b32.xlu0 %v451, 127
          %v492 = vpop.permute.xlu0 %491
          %493 = vrot.lane.b32.xlu0 %v452, 127
          %v494 = vpop.permute.xlu0 %493
          %v501 = vsel %vm411, %v484, 0.0
          %v502 = vsel %vm411, %v486, 0.0
          %v503 = vsel %vm411, %v488, 0.0
          %v504 = vsel %vm411, %v490, 0.0
          %v505 = vsel %vm411, %v492, 0.0
          %v506 = vsel %vm411, %v494, 0.0
          %v507 = vsub.f32 %v501, %v477
          %v508 = vsub.f32 %v502, %v478
          %v509 = vsub.f32 %v503, %v479
          %v510 = vsub.f32 %v504, %v480
          %v511 = vsub.f32 %v505, %v481
          %v512 = vsub.f32 %v506, %v482
          %v513 = vmul.f32 %v364, 2.0
          %v514 = vmul.f32 %v365, 2.0
          %v515 = vmul.f32 %v366, 2.0
          %v516 = vmul.f32 %v367, 2.0
          %v517 = vmul.f32 %v368, 2.0
          %v518 = vmul.f32 %v369, 2.0
          %v519 = vadd.f32 %v477, %v513
          %v520 = vadd.f32 %v478, %v514
          %v521 = vadd.f32 %v479, %v515
          %v522 = vadd.f32 %v480, %v516
          %v523 = vadd.f32 %v481, %v517
          %v524 = vadd.f32 %v482, %v518
          %v525 = vadd.f32 %v519, %v501
          %v526 = vadd.f32 %v520, %v502
          %v527 = vadd.f32 %v521, %v503
          %v528 = vadd.f32 %v522, %v504
          %v529 = vadd.f32 %v523, %v505
          %v530 = vadd.f32 %v524, %v506
          %v531 = vrot.slane %v507, 7
          %v532 = vrot.slane %v509, 7
          %v533 = vrot.slane %v511, 7
          %v534 = vrot.slane %v508, 7
          %v535 = vrot.slane %v510, 7
          %v536 = vrot.slane %v512, 7
          %vm537 = vcmp.lt.s32.totalorder %v408, 1
          %v538 = vsel %vm537, %v531, %v534
          %v539 = vsel %vm537, %v532, %v535
          %v540 = vsel %vm537, %v533, %v536
          %v541 = vsel %vm537, %v534, %v531
          %v542 = vsel %vm537, %v535, %v532
          %v543 = vsel %vm537, %v536, %v533
          %v544 = vsel %vm412, %v541, 0.0
          %v545 = vsel %vm413, %v538, 0.0
          %v546 = vsel %vm412, %v542, 0.0
          %v547 = vsel %vm413, %v539, 0.0
          %v548 = vsel %vm412, %v543, 0.0
          %v549 = vsel %vm413, %v540, 0.0
          %v550 = vrot.slane %v507, 1
          %v551 = vrot.slane %v509, 1
          %v552 = vrot.slane %v511, 1
          %v553 = vrot.slane %v508, 1
          %v554 = vrot.slane %v510, 1
          %v555 = vrot.slane %v512, 1
          %vm556 = vcmp.lt.s32.totalorder %v408, 7
          %v557 = vsel %vm556, %v550, %v553
          %v558 = vsel %vm556, %v551, %v554
          %v559 = vsel %vm556, %v552, %v555
          %v560 = vsel %vm556, %v553, %v550
          %v561 = vsel %vm556, %v554, %v551
          %v562 = vsel %vm556, %v555, %v552
          %v563 = vsel %vm414, %v557, 0.0
          %v564 = vsel %vm415, %v560, 0.0
          %v565 = vsel %vm414, %v558, 0.0
          %v566 = vsel %vm415, %v561, 0.0
          %v567 = vsel %vm414, %v559, 0.0
          %v568 = vsel %vm415, %v562, 0.0
          %v569 = vrot.slane %v525, 7
          %v570 = vrot.slane %v527, 7
          %v571 = vrot.slane %v529, 7
          %v572 = vrot.slane %v526, 7
          %v573 = vrot.slane %v528, 7
          %v574 = vrot.slane %v530, 7
          %v575 = vsel %vm537, %v569, %v572
          %v576 = vsel %vm537, %v570, %v573
          %v577 = vsel %vm537, %v571, %v574
          %v578 = vsel %vm537, %v572, %v569
          %v579 = vsel %vm537, %v573, %v570
          %v580 = vsel %vm537, %v574, %v571
          %v581 = vsel %vm412, %v578, 0.0
          %v582 = vsel %vm413, %v575, 0.0
          %v583 = vsel %vm412, %v579, 0.0
          %v584 = vsel %vm413, %v576, 0.0
          %v585 = vsel %vm412, %v580, 0.0
          %v586 = vsel %vm413, %v577, 0.0
          %v587 = vrot.slane %v525, 1
          %v588 = vrot.slane %v527, 1
          %v589 = vrot.slane %v529, 1
          %v590 = vrot.slane %v526, 1
          %v591 = vrot.slane %v528, 1
          %v592 = vrot.slane %v530, 1
          %v593 = vsel %vm556, %v587, %v590
          %v594 = vsel %vm556, %v588, %v591
          %v595 = vsel %vm556, %v589, %v592
          %v596 = vsel %vm556, %v590, %v587
          %v597 = vsel %vm556, %v591, %v588
          %v598 = vsel %vm556, %v592, %v589
          %v599 = vsel %vm414, %v593, 0.0
          %v600 = vsel %vm415, %v596, 0.0
          %v601 = vsel %vm414, %v594, 0.0
          %v602 = vsel %vm415, %v597, 0.0
          %v603 = vsel %vm414, %v595, 0.0
          %v604 = vsel %vm415, %v598, 0.0
          %v605 = vmul.f32 %v507, 2.0
          %v606 = vmul.f32 %v508, 2.0
          %v607 = vmul.f32 %v509, 2.0
          %v608 = vmul.f32 %v510, 2.0
          %v609 = vmul.f32 %v511, 2.0
          %v610 = vmul.f32 %v512, 2.0
          %v611 = vadd.f32 %v544, %v605
          %v612 = vadd.f32 %v545, %v606
          %v613 = vadd.f32 %v546, %v607
          %v614 = vadd.f32 %v547, %v608
          %v615 = vadd.f32 %v548, %v609
          %v616 = vadd.f32 %v549, %v610
          %v617 = vadd.f32 %v611, %v563
          %v618 = vadd.f32 %v612, %v564
          %v619 = vadd.f32 %v613, %v565
          %v620 = vadd.f32 %v614, %v566
          %v621 = vadd.f32 %v615, %v567
          %v622 = vadd.f32 %v616, %v568
          %v623 = vsub.f32 %v599, %v581
          %v624 = vsub.f32 %v600, %v582
          %v625 = vsub.f32 %v601, %v583
          %v626 = vsub.f32 %v602, %v584
          %v627 = vsub.f32 %v603, %v585
          %v628 = vsub.f32 %v604, %v586
          %v629 = vmul.f32 %v617, %v617
          %v630 = vmul.f32 %v618, %v618
          %v631 = vmul.f32 %v619, %v619
          %v632 = vmul.f32 %v620, %v620
          %v633 = vmul.f32 %v621, %v621
          %v634 = vmul.f32 %v622, %v622
          %v635 = vmul.f32 %v623, %v623
          %v636 = vmul.f32 %v624, %v624
          %v637 = vmul.f32 %v625, %v625
          %v638 = vmul.f32 %v626, %v626
          %v639 = vmul.f32 %v627, %v627
          %v640 = vmul.f32 %v628, %v628
          %v641 = vadd.f32 %v629, %v635
          %v642 = vadd.f32 %v630, %v636
          %v643 = vadd.f32 %v631, %v637
          %v644 = vadd.f32 %v632, %v638
          %v645 = vadd.f32 %v633, %v639
          %v646 = vadd.f32 %v634, %v640
          %v647 = vadd.f32 %v641, 1e-08
          %v648 = vadd.f32 %v642, 1e-08
          %v649 = vadd.f32 %v643, 1e-08
          %v650 = vadd.f32 %v644, 1e-08
          %v651 = vadd.f32 %v645, 1e-08
          %v652 = vadd.f32 %v646, 1e-08
          %v653 = vrsqrt.pop %v647
          %v654 = vmul.f32 %v653, %v647
          %v655 = vmul.f32 %v654, %v653
          %v656 = vmul.f32 0.5, %v655
          %v657 = vsub.f32 1.5, %v656
          %v658 = vmul.f32 %v653, %v657
          %v659 = vmul.f32 %v647, %v658
          %vm660 = vcmp.eq.f32.partialorder %v647, inf
          %v661 = vsel %vm660, %v647, %v659
          %vm662 = vcmp.eq.f32.partialorder %v647, 0.0
          %v663 = vand.u32 %v647, 2147483648
          %v664 = vsel %vm662, %v663, %v661
          %v665 = vrsqrt.pop %v648
          %v666 = vmul.f32 %v665, %v648
          %v667 = vmul.f32 %v666, %v665
          %v668 = vmul.f32 0.5, %v667
          %v669 = vsub.f32 1.5, %v668
          %v670 = vmul.f32 %v665, %v669
          %v671 = vmul.f32 %v648, %v670
          %vm672 = vcmp.eq.f32.partialorder %v648, inf
          %v673 = vsel %vm672, %v648, %v671
          %vm674 = vcmp.eq.f32.partialorder %v648, 0.0
          %v675 = vand.u32 %v648, 2147483648
          %v676 = vsel %vm674, %v675, %v673
          %v677 = vrsqrt.pop %v649
          %v678 = vmul.f32 %v677, %v649
          %v679 = vmul.f32 %v678, %v677
          %v680 = vmul.f32 0.5, %v679
          %v681 = vsub.f32 1.5, %v680
          %v682 = vmul.f32 %v677, %v681
          %v683 = vmul.f32 %v649, %v682
          %vm684 = vcmp.eq.f32.partialorder %v649, inf
          %v685 = vsel %vm684, %v649, %v683
          %vm686 = vcmp.eq.f32.partialorder %v649, 0.0
          %v687 = vand.u32 %v649, 2147483648
          %v688 = vsel %vm686, %v687, %v685
          %v689 = vrsqrt.pop %v650
          %v690 = vmul.f32 %v689, %v650
          %v691 = vmul.f32 %v690, %v689
          %v692 = vmul.f32 0.5, %v691
          %v693 = vsub.f32 1.5, %v692
          %v694 = vmul.f32 %v689, %v693
          %v695 = vmul.f32 %v650, %v694
          %vm696 = vcmp.eq.f32.partialorder %v650, inf
          %v697 = vsel %vm696, %v650, %v695
          %vm698 = vcmp.eq.f32.partialorder %v650, 0.0
          %v699 = vand.u32 %v650, 2147483648
          %v700 = vsel %vm698, %v699, %v697
          %v701 = vrsqrt.pop %v651
          %v702 = vmul.f32 %v701, %v651
          %v703 = vmul.f32 %v702, %v701
          %v704 = vmul.f32 0.5, %v703
          %v705 = vsub.f32 1.5, %v704
          %v706 = vmul.f32 %v701, %v705
          %v707 = vmul.f32 %v651, %v706
          %vm708 = vcmp.eq.f32.partialorder %v651, inf
          %v709 = vsel %vm708, %v651, %v707
          %vm710 = vcmp.eq.f32.partialorder %v651, 0.0
          %v711 = vand.u32 %v651, 2147483648
          %v712 = vsel %vm710, %v711, %v709
          %v713 = vrsqrt.pop %v652
          %v714 = vmul.f32 %v713, %v652
          %v715 = vmul.f32 %v714, %v713
          %v716 = vmul.f32 0.5, %v715
          %v717 = vsub.f32 1.5, %v716
          %v718 = vmul.f32 %v713, %v717
          %v719 = vmul.f32 %v652, %v718
          %vm720 = vcmp.eq.f32.partialorder %v652, inf
          %v721 = vsel %vm720, %v652, %v719
          %vm722 = vcmp.eq.f32.partialorder %v652, 0.0
          %v723 = vand.u32 %v652, 2147483648
          %v724 = vsel %vm722, %v723, %v721
          %725 = vrot.lane.b32.xlu0 %v382, 16
          %v726 = vpop.permute.xlu0 %725
          %v727 = vsel %vm416, %v726, %v382
          %728 = vrot.lane.b32.xlu0 %v383, 16
          %v729 = vpop.permute.xlu0 %728
          %v730 = vsel %vm416, %v729, %v383
          %731 = vrot.lane.b32.xlu0 %v384, 16
          %v732 = vpop.permute.xlu0 %731
          %v733 = vsel %vm416, %v732, %v384
          %734 = vrot.lane.b32.xlu0 %v385, 16
          %v735 = vpop.permute.xlu0 %734
          %v736 = vsel %vm416, %v735, %v385
          %737 = vrot.lane.b32.xlu0 %v386, 16
          %v738 = vpop.permute.xlu0 %737
          %v739 = vsel %vm416, %v738, %v386
          %740 = vrot.lane.b32.xlu0 %v387, 16
          %v741 = vpop.permute.xlu0 %740
          %v742 = vsel %vm416, %v741, %v387
          %743 = vrot.lane.b32.xlu0 %v727, 16
          %v744 = vpop.permute.xlu0 %743
          %745 = vrot.lane.b32.xlu0 %v730, 16
          %v746 = vpop.permute.xlu0 %745
          %747 = vrot.lane.b32.xlu0 %v733, 16
          %v748 = vpop.permute.xlu0 %747
          %749 = vrot.lane.b32.xlu0 %v736, 16
          %v750 = vpop.permute.xlu0 %749
          %751 = vrot.lane.b32.xlu0 %v739, 16
          %v752 = vpop.permute.xlu0 %751
          %753 = vrot.lane.b32.xlu0 %v742, 16
          %v754 = vpop.permute.xlu0 %753
          %v755 = vsel %vm416, %v744, %v382
          %v756 = vsel %vm416, %v746, %v383
          %v757 = vsel %vm416, %v748, %v384
          %v758 = vsel %vm416, %v750, %v385
          %v759 = vsel %vm416, %v752, %v386
          %v760 = vsel %vm416, %v754, %v387
          %767 = vrot.lane.b32.xlu0 %v755, 113
          %v768 = vpop.permute.xlu0 %767
          %769 = vrot.lane.b32.xlu0 %v756, 113
          %v770 = vpop.permute.xlu0 %769
          %771 = vrot.lane.b32.xlu0 %v757, 113
          %v772 = vpop.permute.xlu0 %771
          %773 = vrot.lane.b32.xlu0 %v758, 113
          %v774 = vpop.permute.xlu0 %773
          %775 = vrot.lane.b32.xlu0 %v759, 113
          %v776 = vpop.permute.xlu0 %775
          %777 = vrot.lane.b32.xlu0 %v760, 113
          %v778 = vpop.permute.xlu0 %777
          %v785 = vsel %vm410, %v768, 0.0
          %v786 = vsel %vm410, %v770, 0.0
          %v787 = vsel %vm410, %v772, 0.0
          %v788 = vsel %vm410, %v774, 0.0
          %v789 = vsel %vm410, %v776, 0.0
          %v790 = vsel %vm410, %v778, 0.0
          %791 = vrot.lane.b32.xlu0 %v755, 127
          %v792 = vpop.permute.xlu0 %791
          %793 = vrot.lane.b32.xlu0 %v756, 127
          %v794 = vpop.permute.xlu0 %793
          %795 = vrot.lane.b32.xlu0 %v757, 127
          %v796 = vpop.permute.xlu0 %795
          %797 = vrot.lane.b32.xlu0 %v758, 127
          %v798 = vpop.permute.xlu0 %797
          %799 = vrot.lane.b32.xlu0 %v759, 127
          %v800 = vpop.permute.xlu0 %799
          %801 = vrot.lane.b32.xlu0 %v760, 127
          %v802 = vpop.permute.xlu0 %801
          %v809 = vsel %vm411, %v792, 0.0
          %v810 = vsel %vm411, %v794, 0.0
          %v811 = vsel %vm411, %v796, 0.0
          %v812 = vsel %vm411, %v798, 0.0
          %v813 = vsel %vm411, %v800, 0.0
          %v814 = vsel %vm411, %v802, 0.0
          %v815 = vsub.f32 %v809, %v785
          %v816 = vsub.f32 %v810, %v786
          %v817 = vsub.f32 %v811, %v787
          %v818 = vsub.f32 %v812, %v788
          %v819 = vsub.f32 %v813, %v789
          %v820 = vsub.f32 %v814, %v790
          %v821 = vmul.f32 %v382, 2.0
          %v822 = vmul.f32 %v383, 2.0
          %v823 = vmul.f32 %v384, 2.0
          %v824 = vmul.f32 %v385, 2.0
          %v825 = vmul.f32 %v386, 2.0
          %v826 = vmul.f32 %v387, 2.0
          %v827 = vadd.f32 %v785, %v821
          %v828 = vadd.f32 %v786, %v822
          %v829 = vadd.f32 %v787, %v823
          %v830 = vadd.f32 %v788, %v824
          %v831 = vadd.f32 %v789, %v825
          %v832 = vadd.f32 %v790, %v826
          %v833 = vadd.f32 %v827, %v809
          %v834 = vadd.f32 %v828, %v810
          %v835 = vadd.f32 %v829, %v811
          %v836 = vadd.f32 %v830, %v812
          %v837 = vadd.f32 %v831, %v813
          %v838 = vadd.f32 %v832, %v814
          %v839 = vrot.slane %v815, 7
          %v840 = vrot.slane %v817, 7
          %v841 = vrot.slane %v819, 7
          %v842 = vrot.slane %v816, 7
          %v843 = vrot.slane %v818, 7
          %v844 = vrot.slane %v820, 7
          %v845 = vsel %vm537, %v839, %v842
          %v846 = vsel %vm537, %v840, %v843
          %v847 = vsel %vm537, %v841, %v844
          %v848 = vsel %vm537, %v842, %v839
          %v849 = vsel %vm537, %v843, %v840
          %v850 = vsel %vm537, %v844, %v841
          %v851 = vsel %vm412, %v848, 0.0
          %v852 = vsel %vm413, %v845, 0.0
          %v853 = vsel %vm412, %v849, 0.0
          %v854 = vsel %vm413, %v846, 0.0
          %v855 = vsel %vm412, %v850, 0.0
          %v856 = vsel %vm413, %v847, 0.0
          %v857 = vrot.slane %v815, 1
          %v858 = vrot.slane %v817, 1
          %v859 = vrot.slane %v819, 1
          %v860 = vrot.slane %v816, 1
          %v861 = vrot.slane %v818, 1
          %v862 = vrot.slane %v820, 1
          %v863 = vsel %vm556, %v857, %v860
          %v864 = vsel %vm556, %v858, %v861
          %v865 = vsel %vm556, %v859, %v862
          %v866 = vsel %vm556, %v860, %v857
          %v867 = vsel %vm556, %v861, %v858
          %v868 = vsel %vm556, %v862, %v859
          %v869 = vsel %vm414, %v863, 0.0
          %v870 = vsel %vm415, %v866, 0.0
          %v871 = vsel %vm414, %v864, 0.0
          %v872 = vsel %vm415, %v867, 0.0
          %v873 = vsel %vm414, %v865, 0.0
          %v874 = vsel %vm415, %v868, 0.0
          %v875 = vrot.slane %v833, 7
          %v876 = vrot.slane %v835, 7
          %v877 = vrot.slane %v837, 7
          %v878 = vrot.slane %v834, 7
          %v879 = vrot.slane %v836, 7
          %v880 = vrot.slane %v838, 7
          %v881 = vsel %vm537, %v875, %v878
          %v882 = vsel %vm537, %v876, %v879
          %v883 = vsel %vm537, %v877, %v880
          %v884 = vsel %vm537, %v878, %v875
          %v885 = vsel %vm537, %v879, %v876
          %v886 = vsel %vm537, %v880, %v877
          %v887 = vsel %vm412, %v884, 0.0
          %v888 = vsel %vm413, %v881, 0.0
          %v889 = vsel %vm412, %v885, 0.0
          %v890 = vsel %vm413, %v882, 0.0
          %v891 = vsel %vm412, %v886, 0.0
          %v892 = vsel %vm413, %v883, 0.0
          %v893 = vrot.slane %v833, 1
          %v894 = vrot.slane %v835, 1
          %v895 = vrot.slane %v837, 1
          %v896 = vrot.slane %v834, 1
          %v897 = vrot.slane %v836, 1
          %v898 = vrot.slane %v838, 1
          %v899 = vsel %vm556, %v893, %v896
          %v900 = vsel %vm556, %v894, %v897
          %v901 = vsel %vm556, %v895, %v898
          %v902 = vsel %vm556, %v896, %v893
          %v903 = vsel %vm556, %v897, %v894
          %v904 = vsel %vm556, %v898, %v895
          %v905 = vsel %vm414, %v899, 0.0
          %v906 = vsel %vm415, %v902, 0.0
          %v907 = vsel %vm414, %v900, 0.0
          %v908 = vsel %vm415, %v903, 0.0
          %v909 = vsel %vm414, %v901, 0.0
          %v910 = vsel %vm415, %v904, 0.0
          %v911 = vmul.f32 %v815, 2.0
          %v912 = vmul.f32 %v816, 2.0
          %v913 = vmul.f32 %v817, 2.0
          %v914 = vmul.f32 %v818, 2.0
          %v915 = vmul.f32 %v819, 2.0
          %v916 = vmul.f32 %v820, 2.0
          %v917 = vadd.f32 %v851, %v911
          %v918 = vadd.f32 %v852, %v912
          %v919 = vadd.f32 %v853, %v913
          %v920 = vadd.f32 %v854, %v914
          %v921 = vadd.f32 %v855, %v915
          %v922 = vadd.f32 %v856, %v916
          %v923 = vadd.f32 %v917, %v869
          %v924 = vadd.f32 %v918, %v870
          %v925 = vadd.f32 %v919, %v871
          %v926 = vadd.f32 %v920, %v872
          %v927 = vadd.f32 %v921, %v873
          %v928 = vadd.f32 %v922, %v874
          %v929 = vsub.f32 %v905, %v887
          %v930 = vsub.f32 %v906, %v888
          %v931 = vsub.f32 %v907, %v889
          %v932 = vsub.f32 %v908, %v890
          %v933 = vsub.f32 %v909, %v891
          %v934 = vsub.f32 %v910, %v892
          %v935 = vmul.f32 %v923, %v923
          %v936 = vmul.f32 %v924, %v924
          %v937 = vmul.f32 %v925, %v925
          %v938 = vmul.f32 %v926, %v926
          %v939 = vmul.f32 %v927, %v927
          %v940 = vmul.f32 %v928, %v928
          %v941 = vmul.f32 %v929, %v929
          %v942 = vmul.f32 %v930, %v930
          %v943 = vmul.f32 %v931, %v931
          %v944 = vmul.f32 %v932, %v932
          %v945 = vmul.f32 %v933, %v933
          %v946 = vmul.f32 %v934, %v934
          %v947 = vadd.f32 %v935, %v941
          %v948 = vadd.f32 %v936, %v942
          %v949 = vadd.f32 %v937, %v943
          %v950 = vadd.f32 %v938, %v944
          %v951 = vadd.f32 %v939, %v945
          %v952 = vadd.f32 %v940, %v946
          %v953 = vadd.f32 %v947, 1e-08
          %v954 = vadd.f32 %v948, 1e-08
          %v955 = vadd.f32 %v949, 1e-08
          %v956 = vadd.f32 %v950, 1e-08
          %v957 = vadd.f32 %v951, 1e-08
          %v958 = vadd.f32 %v952, 1e-08
          %v959 = vrsqrt.pop %v953
          %v960 = vmul.f32 %v959, %v953
          %v961 = vmul.f32 %v960, %v959
          %v962 = vmul.f32 0.5, %v961
          %v963 = vsub.f32 1.5, %v962
          %v964 = vmul.f32 %v959, %v963
          %v965 = vmul.f32 %v953, %v964
          %vm966 = vcmp.eq.f32.partialorder %v953, inf
          %v967 = vsel %vm966, %v953, %v965
          %vm968 = vcmp.eq.f32.partialorder %v953, 0.0
          %v969 = vand.u32 %v953, 2147483648
          %v970 = vsel %vm968, %v969, %v967
          %v971 = vrsqrt.pop %v954
          %v972 = vmul.f32 %v971, %v954
          %v973 = vmul.f32 %v972, %v971
          %v974 = vmul.f32 0.5, %v973
          %v975 = vsub.f32 1.5, %v974
          %v976 = vmul.f32 %v971, %v975
          %v977 = vmul.f32 %v954, %v976
          %vm978 = vcmp.eq.f32.partialorder %v954, inf
          %v979 = vsel %vm978, %v954, %v977
          %vm980 = vcmp.eq.f32.partialorder %v954, 0.0
          %v981 = vand.u32 %v954, 2147483648
          %v982 = vsel %vm980, %v981, %v979
          %v983 = vrsqrt.pop %v955
          %v984 = vmul.f32 %v983, %v955
          %v985 = vmul.f32 %v984, %v983
          %v986 = vmul.f32 0.5, %v985
          %v987 = vsub.f32 1.5, %v986
          %v988 = vmul.f32 %v983, %v987
          %v989 = vmul.f32 %v955, %v988
          %vm990 = vcmp.eq.f32.partialorder %v955, inf
          %v991 = vsel %vm990, %v955, %v989
          %vm992 = vcmp.eq.f32.partialorder %v955, 0.0
          %v993 = vand.u32 %v955, 2147483648
          %v994 = vsel %vm992, %v993, %v991
          %v995 = vrsqrt.pop %v956
          %v996 = vmul.f32 %v995, %v956
          %v997 = vmul.f32 %v996, %v995
          %v998 = vmul.f32 0.5, %v997
          %v999 = vsub.f32 1.5, %v998
          %v1000 = vmul.f32 %v995, %v999
          %v1001 = vmul.f32 %v956, %v1000
          %vm1002 = vcmp.eq.f32.partialorder %v956, inf
          %v1003 = vsel %vm1002, %v956, %v1001
          %vm1004 = vcmp.eq.f32.partialorder %v956, 0.0
          %v1005 = vand.u32 %v956, 2147483648
          %v1006 = vsel %vm1004, %v1005, %v1003
          %v1007 = vrsqrt.pop %v957
          %v1008 = vmul.f32 %v1007, %v957
          %v1009 = vmul.f32 %v1008, %v1007
          %v1010 = vmul.f32 0.5, %v1009
          %v1011 = vsub.f32 1.5, %v1010
          %v1012 = vmul.f32 %v1007, %v1011
          %v1013 = vmul.f32 %v957, %v1012
          %vm1014 = vcmp.eq.f32.partialorder %v957, inf
          %v1015 = vsel %vm1014, %v957, %v1013
          %vm1016 = vcmp.eq.f32.partialorder %v957, 0.0
          %v1017 = vand.u32 %v957, 2147483648
          %v1018 = vsel %vm1016, %v1017, %v1015
          %v1019 = vrsqrt.pop %v958
          %v1020 = vmul.f32 %v1019, %v958
          %v1021 = vmul.f32 %v1020, %v1019
          %v1022 = vmul.f32 0.5, %v1021
          %v1023 = vsub.f32 1.5, %v1022
          %v1024 = vmul.f32 %v1019, %v1023
          %v1025 = vmul.f32 %v958, %v1024
          %vm1026 = vcmp.eq.f32.partialorder %v958, inf
          %v1027 = vsel %vm1026, %v958, %v1025
          %vm1028 = vcmp.eq.f32.partialorder %v958, 0.0
          %v1029 = vand.u32 %v958, 2147483648
          %v1030 = vsel %vm1028, %v1029, %v1027
          %v1031 = vld [vmem:[#allocation7] sm:$0xff]
          %v1032 = vld [vmem:[#allocation7 + $0x8] sm:$0xff]
          %v1033 = vsub.f32 %v970, %v664
          %v1034 = vsub.f32 %v982, %v676
          %v1035 = vsub.f32 %v994, %v688
          %v1036 = vsub.f32 %v1006, %v700
          %v1037 = vsub.f32 %v1018, %v712
          %v1038 = vsub.f32 %v1030, %v724
          %v1039 = vand.u32 2147483647, %v1033
          %v1040 = vand.u32 2147483647, %v1034
          %v1041 = vand.u32 2147483647, %v1035
          %v1042 = vand.u32 2147483647, %v1036
          %v1043 = vand.u32 2147483647, %v1037
          %v1044 = vand.u32 2147483647, %v1038
          %v1045 = vsel %vm390, %v1039, 0.0
          %v1046 = vsel %vm390, %v1041, 0.0
          %v1047 = vadd.f32 %v1045, %v1046
          %v1048 = vsel %vm390, %v1043, 0.0
          %v1049 = vadd.f32 %v1047, %v1048
          %v1050 = vsel %vm390, %v1040, 0.0
          %v1051 = vsel %vm390, %v1042, 0.0
          %v1052 = vadd.f32 %v1050, %v1051
          %v1053 = vsel %vm390, %v1044, 0.0
          %v1054 = vadd.f32 %v1052, %v1053
          %v1055 = vadd.f32 %v1031, %v1049
          %v1056 = vadd.f32 %v1032, %v1054
          %1057 = vst.msk [vmem:[#allocation7] sm:$0xff] %vm390, %v1055
          %1058 = vst.msk [vmem:[#allocation7 + $0x8] sm:$0xff] %vm390, %v1056
          %v1059 = vld [vmem:[#allocation4] sm:$0xff]
          %v1060 = vld [vmem:[#allocation4 + $0x8] sm:$0xff]
          %v1061 = vmul.f32 %v1059, %v306
          %v1062 = vmul.f32 %v1060, %v307
          %v1063 = vrot.slane %v1061, 4
          %v1064 = vadd.f32 %v1061, %v1063
          %v1065 = vrot.slane %v1064, 2
          %v1066 = vadd.f32 %v1064, %v1065
          %v1067 = vrot.slane %v1066, 1
          %v1068 = vadd.f32 %v1066, %v1067
          %v1069 = vrot.slane %v1062, 4
          %v1070 = vadd.f32 %v1062, %v1069
          %v1071 = vrot.slane %v1070, 2
          %v1072 = vadd.f32 %v1070, %v1071
          %v1073 = vrot.slane %v1072, 1
          %v1074 = vadd.f32 %v1072, %v1073
          %v1075 = vadd.f32 %v1068, %v1074
          %1076 = vadd.xlane.f32.xlu0 %v1075
          %v1077 = vpop.xlane.xlu0 %1076
          %v1078 = vld [vmem:[#allocation5] sm:$0x1]
          %v1079 = vmul.f32 %v1078, %v336
          %v1080 = vmax.f32 %v1079, 1e-08
          %v1081 = vld [vmem:[#allocation8] sm:$0x1]
          %v1082 = vrcp.pop %v1080
          %v1083 = vmul.f32 %v1080, %v1082
          %v1084 = vsub.f32 1.0, %v1083
          %v1085 = vmul.f32 %v1082, %v1084
          %v1086 = vadd.f32 %v1082, %v1085
          %vm1087 = vweird.f32 %v1080
          %vm1088 = vweird.f32 %v1082
          %vm1089 = vmor %vm1087, %vm1088
          %v1090 = vsel %vm1089, %v1082, %v1086
          %v1091 = vand.u32 2147483647, %v1080
          %vm1092 = vcmp.eq.f32.partialorder %v1091, 8.507059e+37
          %v1093 = vand.u32 %v1080, 2147483648
          %v1094 = vor.u32 1.1754944e-38, %v1093
          %v1095 = vsel %vm1092, %v1094, %v1090
          %v1096 = vmul.f32 %v1077, %v1095
          %v1097 = vsub.f32 1.0, %v1096
          %v1098 = vadd.f32 %v1081, %v1097
          %vm1099 = vcmask 0
          %1100 = vst.msk [vmem:[#allocation8] sm:$0x1] %vm1099, %v1098
        $region52: #{tpu_custom_call.1} parent=31 // pred_fallthru
          _
        %p1101 = scmp.lt.s32.totalorder %s28, 3
        // Predicated region
        $region53: #{tpu_custom_call.1} parent=31 // pred_check
          %p1102 = pneg %p1101
        $region54: #{tpu_custom_call.1} parent=31 // pred_check_branch
          %1104 = sbr.rel (%p1102) target = $region56
        $region55: #{tpu_custom_call.1} parent=31 // pred_region
          %v1105 = vld [vmem:[%s240] sm:$0xff]
          %v1106 = vld [vmem:[%s240 + $0x8] sm:$0xff]
          %v1107 = vld [vmem:[%s240 + $0x10] sm:$0xff]
          %v1108 = vld [vmem:[%s240 + $0x18] sm:$0xff]
          %v1109 = vld [vmem:[%s240 + $0x20] sm:$0xff]
          %v1110 = vld [vmem:[%s240 + $0x28] sm:$0xff]
          %vm1111 = vcmask 130048
          %1112 = vst.msk [vmem:[#allocation2] sm:$0xff] %vm1111, %v1105
          %1113 = vst.msk [vmem:[#allocation2 + $0x8] sm:$0xff] %vm1111, %v1106
          %1114 = vst.msk [vmem:[#allocation2 + $0x10] sm:$0xff] %vm1111, %v1107
          %1115 = vst.msk [vmem:[#allocation2 + $0x18] sm:$0xff] %vm1111, %v1108
          %1116 = vst.msk [vmem:[#allocation2 + $0x20] sm:$0xff] %vm1111, %v1109
          %1117 = vst.msk [vmem:[#allocation2 + $0x28] sm:$0xff] %vm1111, %v1110
          %v1118 = vld [vmem:[%s250] sm:$0xff]
          %v1119 = vld [vmem:[%s250 + $0x8] sm:$0xff]
          %v1120 = vld [vmem:[%s250 + $0x10] sm:$0xff]
          %v1121 = vld [vmem:[%s250 + $0x18] sm:$0xff]
          %v1122 = vld [vmem:[%s250 + $0x20] sm:$0xff]
          %v1123 = vld [vmem:[%s250 + $0x28] sm:$0xff]
          %1124 = vst.msk [vmem:[#allocation3] sm:$0xff] %vm1111, %v1118
          %1125 = vst.msk [vmem:[#allocation3 + $0x8] sm:$0xff] %vm1111, %v1119
          %1126 = vst.msk [vmem:[#allocation3 + $0x10] sm:$0xff] %vm1111, %v1120
          %1127 = vst.msk [vmem:[#allocation3 + $0x18] sm:$0xff] %vm1111, %v1121
          %1128 = vst.msk [vmem:[#allocation3 + $0x20] sm:$0xff] %vm1111, %v1122
          %1129 = vst.msk [vmem:[#allocation3 + $0x28] sm:$0xff] %vm1111, %v1123
          %v1130 = vld [vmem:[%s260] sm:$0xff]
          %v1131 = vld [vmem:[%s260 + $0x8] sm:$0xff]
          %1132 = vst [vmem:[#allocation4] sm:$0xff] %v1130
          %1133 = vst [vmem:[#allocation4 + $0x8] sm:$0xff] %v1131
          %vm1134 = vcmask 0
          %1135 = vst.msk [vmem:[#allocation5] sm:$0x1] %vm1134, %v336
        $region56: #{tpu_custom_call.1} parent=31 // pred_fallthru
          _
        %p1136 = scmp.eq.s32.totalorder %s28, 3
        // Predicated region
        $region57: #{tpu_custom_call.1} parent=31 // pred_check
          %p1137 = pneg %p1136
        $region58: #{tpu_custom_call.1} parent=31 // pred_check_branch
          %1139 = sbr.rel (%p1137) target = $region60
        $region59: #{tpu_custom_call.1} parent=31 // pred_region
          %v1140 = vld [vmem:[#allocation6] sm:$0xff]
          %v1141 = vld [vmem:[#allocation6 + $0x8] sm:$0xff]
          %vm1142 = vcmask 130048
          %v1143 = vsel %vm1142, %v1140, 0.0
          %v1144 = vsel %vm1142, %v1141, 0.0
          %v1145 = vadd.f32 %v1143, %v1144
          %1146 = vadd.xlane.f32.xlu0 %v1145
          %v1147 = vpop.xlane.xlu0 %1146
          %v1148 = vrot.slane %v1147, 4
          %v1149 = vadd.f32 %v1147, %v1148
          %v1150 = vrot.slane %v1149, 2
          %v1151 = vadd.f32 %v1149, %v1150
          %v1152 = vrot.slane %v1151, 1
          %v1153 = vadd.f32 %v1151, %v1152
          %s1154 = vtos %v1153
          %v1155 = vld [vmem:[#allocation7] sm:$0xff]
          %v1156 = vld [vmem:[#allocation7 + $0x8] sm:$0xff]
          %v1157 = vsel %vm1142, %v1155, 0.0
          %v1158 = vsel %vm1142, %v1156, 0.0
          %v1159 = vadd.f32 %v1157, %v1158
          %1160 = vadd.xlane.f32.xlu0 %v1159
          %v1161 = vpop.xlane.xlu0 %1160
          %v1162 = vrot.slane %v1161, 4
          %v1163 = vadd.f32 %v1161, %v1162
          %v1164 = vrot.slane %v1163, 2
          %v1165 = vadd.f32 %v1163, %v1164
          %v1166 = vrot.slane %v1165, 1
          %v1167 = vadd.f32 %v1165, %v1166
          %s1168 = vtos %v1167
          %v1169 = vld [vmem:[#allocation8] sm:$0x1]
          %v1170 = vadd.f32 %v1169, 0.0
          %s1171 = vtos %v1170
          %v1172 = vlaneseq
          %v1173 = vand.u32 %v1172, 127
          %vm1174 = vcmp.eq.s32.totalorder %v1173, 0
          %v1175 = vstv %s1154
          %v1176 = vsel %vm1174, %v1175, 0.0
          %vm1177 = vcmp.eq.s32.totalorder %v1173, 1
          %v1178 = vstv %s1168
          %v1179 = vsel %vm1177, %v1178, 0.0
          %v1180 = vadd.f32 %v1176, %v1179
          %vm1181 = vcmp.eq.s32.totalorder %v1173, 2
          %v1182 = vstv %s1171
          %v1183 = vsel %vm1181, %v1182, 0.0
          %v1184 = vadd.f32 %v1180, %v1183
          %1185 = vst [vmem:[%s293] sm:$0xff] %v1184
        $region60: #{tpu_custom_call.1} parent=31 // pred_fallthru
          _
        %s1186 = sand.u32 %s127, 1
        %s1187 = scalar_lea.sflag [#allocation11], %s1186
        %s1188 = sand.u32 %s127, 1
        %s1189 = smul.addr %s1188, 8
        %s1190 = scalar_lea.vmem [#allocation15], %s1189
        // Predicated region
        $region61: #{tpu_custom_call.1} parent=31 // pred_check
          %p1191 = pneg %p137
        $region62: #{tpu_custom_call.1} parent=31 // pred_check_branch
          %1193 = sbr.rel (%p1191) target = $region64
        $region63: #{tpu_custom_call.1} parent=31 // pred_region
          %1195 = vsyncadd %s1187, 0
          %s1196 = smul.addr %s27, 8
          %s1197 = scalar_lea.hbm %s3, %s1196
          %s1199 = sshll.u32 %s1190, 4
          %s1200 = int_to_ptr.vmem [resolvable:$true] %s1199
          %s1201 = sshll.u32 %s1197, 4
          %s1202 = int_to_ptr.hbm [resolvable:$true] %s1201
          %1204 = dma.vmem_to_hbm [thread:$0]  %s1200, 128, %s1202, %s1187
        $region64: #{tpu_custom_call.1} parent=31 // pred_fallthru
          _
      $region32: #{tpu_custom_call.1} parent=5 // pred_fallthru
        _
      %p1205 = scmp.le.s32.totalorder 2, %s18
      // Predicated region
      $region65: #{tpu_custom_call.1} parent=5 // pred_check
        %p1206 = pneg %p1205
      $region66: #{tpu_custom_call.1} parent=5 // pred_check_branch
        %1208 = sbr.rel (%p1206) target = $region68
      $region67: #{tpu_custom_call.1} parent=5 // pred_region
        %s1209 = ssub.s32 %s18, 2
        // Predicated region
        $region69: #{tpu_custom_call.1} parent=67 // pred_check
          %p1210 = pneg %p143
        $region70: #{tpu_custom_call.1} parent=67 // pred_check_branch
          %1212 = sbr.rel (%p1210) target = $region72
        $region71: #{tpu_custom_call.1} parent=67 // pred_region
          %s1213 = sand.u32 %s128, 1
          %s1214 = scalar_lea.sflag [#allocation11], %s1213
          %s1215 = sand.u32 %s128, 1
          %s1216 = smul.addr %s1215, 8
          %s1217 = scalar_lea.vmem [#allocation15], %s1216
          %1219 = dma.done %s1214, 128
        $region72: #{tpu_custom_call.1} parent=67 // pred_fallthru
          _
      $region68: #{tpu_custom_call.1} parent=5 // pred_fallthru
        _
    $region6: #{tpu_custom_call.1} parent=1 // loop_footer
      %s22 = sadd.s32 1, %s18
    $region7: #{tpu_custom_call.1} parent=1 // loop_footer_branch
      %17 = sbr.rel target = $region3
    $region8: #{tpu_custom_call.1} parent=1 // loop_exit
      _
    %1220 = vsyncpa [#allocation10], 1
    %s1221 = scalar_lea.sflag [#allocation10], 1
    %1222 = vsyncpa %s1221, 1
    %1223 = vsyncpa [#allocation13], 1
    %s1224 = scalar_lea.sflag [#allocation13], 1
    %1225 = vsyncpa %s1224, 1
    %1226 = vsyncpa [#allocation11], 1
    %s1227 = scalar_lea.sflag [#allocation11], 1
    %1228 = vsyncpa %s1227, 1

</llo_original>
